<compile_context>
chip_gen: v7x
topology: tpu7x:2x2x1
jax: 0.10.0
libtpu: 0.0.40
codegen_flags: <defaults>
</compile_context>

<pallas_src>
import math

import jax
import jax.numpy as jnp
import numpy as np
from jax.experimental import pallas as pl
from jax.experimental.pallas import tpu as pltpu


def _gaussian_kernel1d(kernel_size: int, sigma: float):
    # mirrors torchvision's _get_gaussian_kernel1d (fixed, non-learnable filter)
    half = (kernel_size - 1) * 0.5
    xs = np.linspace(-half, half, kernel_size)
    pdf = np.exp(-0.5 * (xs / sigma) ** 2)
    k = pdf / pdf.sum()
    return tuple(float(v) for v in k)


def _pick_block_batch(b, c, w, itemsize=4, target_bytes=1 << 20, max_tb=16):
    """Largest divisor of b whose x-block stays small; prefer >=2 grid steps."""
    per_sample = max(1, c * w * itemsize)
    cap = min(max_tb, max(1, target_bytes // per_sample))
    divisors = [d for d in range(1, b + 1) if b % d == 0 and d <= cap]
    tb = max(divisors) if divisors else 1
    if b // tb < 2:  # keep >= 2 grid steps so the batch axis can be split
        pref = [d for d in divisors if b // d >= 2]
        if pref:
            tb = max(pref)
    return tb


def _make_cat_kernel(c, w, c_r, k, tb, gauss):
    gpad = (len(gauss) - 1) // 2      # gaussian "same" padding (=2 for 5 taps)
    cpad = k // 2                     # spatial-conv "same" padding
    f32 = jnp.float32
    bf16 = jnp.bfloat16

    def kernel(params_ref,            # SMEM (8,): [c_a,c_b,c_g,s_a,s_b,s_g,cwt,swt]
               x_ref,                 # VMEM (tb, c, w)      f32
               w1_ref,                # VMEM (c_r, c)        bf16  mlp conv1 (1x1)
               w2_ref,                # VMEM (c, c_r)        bf16  mlp conv2 (1x1)
               wflat_ref,             # VMEM (c, k*c)        bf16  spatial conv, tap-major
               out_ref,               # VMEM (tb, c, w)      f32
               pad_buf,               # VMEM scratch (tb, c, w + 2*max(gpad,cpad)) f32
               feat_buf):             # VMEM scratch (c, 3*tb) f32 stacked MLP inputs
        x = x_ref[...]                                           # (tb, c, w)

        # ---------- gaussian blur along width (zero-padded "same") ----------
        # only the halo columns are zeroed; the interior is overwritten.
        if gpad > 0:
            pad_buf[:, :, 0:gpad] = jnp.zeros((tb, c, gpad), f32)
            pad_buf[:, :, gpad + w:2 * gpad + w] = jnp.zeros((tb, c, gpad), f32)
        pad_buf[:, :, gpad:gpad + w] = x
        xb = gauss[0] * pad_buf[:, :, 0:w]
        for j in range(1, len(gauss)):
            xb = xb + gauss[j] * pad_buf[:, :, j:j + w]
        gmp = jnp.max(xb, axis=-1, keepdims=True)                # (tb, c, 1)

        # ---------- channel branch features (per-sample reductions over w) --
        c_gap = jnp.mean(x, axis=-1, keepdims=True)              # (tb, c, 1)

        # entropy of softmax over w in log-sum-exp form (no pi*log(pi) NaNs)
        xm = jnp.max(x, axis=-1, keepdims=True)
        xc = x - xm
        ex = jnp.exp(xc)
        se = jnp.sum(ex, axis=-1, keepdims=True)                 # (tb, c, 1)
        te = jnp.sum(ex * xc, axis=-1, keepdims=True)
        ent = jnp.log(se) - te * pl.reciprocal(se, approx=True)  # (tb, c, 1)
        ent_min = jnp.min(ent, axis=1, keepdims=True)            # per-sample over channels
        ent_max = jnp.max(ent, axis=1, keepdims=True)
        c_gep = (ent - ent_min) / (ent_max - ent_min)            # (tb, c, 1)

        # ---------- fused MLP over the 3 stacked feature sets ----------------
        # (c, 3*tb) feature matrix assembled via cheap per-column stores; one
        # lane-dense N=3*tb matmul pair instead of 3*tb N=1 matmuls.
        for i in range(tb):
            feat_buf[:, i:i + 1] = c_gap[i]
            feat_buf[:, tb + i:tb + i + 1] = gmp[i]
            feat_buf[:, 2 * tb + i:2 * tb + i + 1] = c_gep[i]
        feats = feat_buf[...].astype(bf16)                       # (c, 3*tb)
        h1 = jnp.maximum(
            jnp.dot(w1_ref[...], feats, preferred_element_type=f32), 0.0)  # (c_r, 3*tb)
        mm = jnp.dot(w2_ref[...], h1.astype(bf16),
                     preferred_element_type=f32)                 # (c, 3*tb)
        channel_score = jax.nn.sigmoid(
            params_ref[0] * mm[:, 0:tb]
            + params_ref[1] * mm[:, tb:2 * tb]
            + params_ref[2] * mm[:, 2 * tb:3 * tb])              # (c, tb)

        # ---------- spatial branch -------------------------------------------
        s_gap = jnp.mean(x, axis=1, keepdims=True)               # (tb, 1, w)

        xmc = jnp.max(x, axis=1, keepdims=True)                  # softmax over channels
        xcc = x - xmc
        ec = jnp.exp(xcc)
        sec = jnp.sum(ec, axis=1, keepdims=True)                 # (tb, 1, w)
        tec = jnp.sum(ec * xcc, axis=1, keepdims=True)
        s_gep = jnp.log(sec) - tec * pl.reciprocal(sec, approx=True)  # (tb, 1, w)
        sg_min = jnp.min(s_gep, axis=-1, keepdims=True)          # per-sample over w
        sg_max = jnp.max(s_gep, axis=-1, keepdims=True)
        s_gep = (s_gep - sg_min) / (sg_max - sg_min)             # (tb, 1, w)

        # broadcast: (1,w) + (c,1) + (1,w) per sample -> (tb, c, w)
        spre = (-s_gap) * params_ref[3] + gmp * params_ref[4] + s_gep * params_ref[5]

        # ---------- spatial conv: one (c, k*c)@(k*c, w) dot per sample --------
        # reuse pad_buf (blur values were already consumed above) for the
        # zero-padded conv input; only the halo columns are (re)zeroed.
        if cpad > 0:
            pad_buf[:, :, 0:cpad] = jnp.zeros((tb, c, cpad), f32)
            pad_buf[:, :, cpad + w:2 * cpad + w] = jnp.zeros((tb, c, cpad), f32)
        pad_buf[:, :, cpad:cpad + w] = spre

        wflat = wflat_ref[...]                                   # (c, k*c) bf16
        cwt = params_ref[6]
        swt = params_ref[7]
        for i in range(tb):
            # stack the k overlapping windows along sublanes (aligned when c%8==0)
            z_i = jnp.concatenate([pad_buf[i, :, j:j + w] for j in range(k)],
                                  axis=0).astype(bf16)           # (k*c, w)
            conv_i = jnp.dot(wflat, z_i, preferred_element_type=f32)  # (c, w)
            scale_i = channel_score[:, i:i + 1] * cwt + jax.nn.sigmoid(conv_i) * swt
            out_ref[i] = scale_i * x[i]

    return kernel


def cat_pallas(x, scalar_params, mlp_w1, mlp_w2, conv_w, gauss, *, block_batch=None):
    """x: NCHW (b, c, 1, w) float32. conv_w: (c_out, c_in, k)."""
    b, c, h, w = x.shape
    assert h == 1, "CAT's gauss_filter (Conv2d(1,1,...)) requires h == 1"
    c_r = mlp_w1.shape[0]
    k = conv_w.shape[-1]
    x3 = x.reshape(b, c, w).astype(jnp.float32)

    tb = block_batch if block_batch is not None else _pick_block_batch(b, c, w)
    assert b % tb == 0
    grid_b = b // tb

    # parameter-only precompute (independent of x): fusion softmax weights
    sp = scalar_params.astype(jnp.float32)
    ecw = jnp.exp(sp[6])
    esw = jnp.exp(sp[7])
    params = jnp.concatenate(
        [sp[:6], jnp.stack([ecw / (ecw + esw), esw / (ecw + esw)])]).astype(jnp.float32)

    # spatial conv weight: (c_out, c_in, k) -> (c_out, k*c_in), tap-major;
    # weights pre-cast to bf16 for the MXU (halves weight DMA, no in-kernel cast)
    wflat = jnp.transpose(conv_w.astype(jnp.float32), (0, 2, 1)).reshape(c, k * c)
    w1_bf = mlp_w1.astype(jnp.bfloat16)
    w2_bf = mlp_w2.astype(jnp.bfloat16)
    wflat_bf = wflat.astype(jnp.bfloat16)

    gpad = (len(gauss) - 1) // 2
    cpad = k // 2
    pmax = max(gpad, cpad)

    kernel = _make_cat_kernel(c=c, w=w, c_r=c_r, k=k, tb=tb,
                              gauss=tuple(float(g) for g in gauss))

    out3 = pl.pallas_call(
        kernel,
        out_shape=jax.ShapeDtypeStruct((b, c, w), jnp.float32),
        grid_spec=pltpu.PrefetchScalarGridSpec(
            num_scalar_prefetch=1,                                # 8 scalars -> SMEM
            grid=(grid_b,),
            in_specs=[
                pl.BlockSpec((tb, c, w), lambda i, p: (i, 0, 0)),     # x: tb samples / step
                pl.BlockSpec((c_r, c), lambda i, p: (0, 0)),          # mlp w1 (full)
                pl.BlockSpec((c, c_r), lambda i, p: (0, 0)),          # mlp w2 (full)
                pl.BlockSpec((c, k * c), lambda i, p: (0, 0)),        # spatial conv w (full)
            ],
            out_specs=pl.BlockSpec((tb, c, w), lambda i, p: (i, 0, 0)),
            scratch_shapes=[
                pltpu.VMEM((tb, c, w + 2 * pmax), jnp.float32),   # shared "same" pad scratch
                pltpu.VMEM((c, 3 * tb), jnp.float32),             # stacked MLP features
            ],
        ),
        compiler_params=pltpu.CompilerParams(
            dimension_semantics=("parallel",),
            vmem_limit_bytes=32 * 1024 * 1024,
        ),
    )(params, x3, w1_bf, w2_bf, wflat_bf)
    return out3.reshape(b, c, 1, w)


def cat_reference(x, scalar_params, mlp_w1, mlp_w2, conv_w, gauss):
    """Pure-JAX reference mirroring the PyTorch forward (f32 HIGHEST = ground truth)."""
    b, c, h, w = x.shape
    xs = x[:, :, 0, :].astype(jnp.float32)
    g = jnp.asarray(gauss, jnp.float32)
    gpad = (len(gauss) - 1) // 2
    xp = jnp.pad(xs, ((0, 0), (0, 0), (gpad, gpad)))
    xb = sum(g[j] * xp[:, :, j:j + w] for j in range(len(gauss)))

    ca, cb, cg, sa, sb, sg, cwr, swr = [scalar_params[i] for i in range(8)]
    HIGH = jax.lax.Precision.HIGHEST

    def mlp(v):  # (b, c)
        h1 = jnp.maximum(jnp.einsum('oc,bc->bo', mlp_w1, v, precision=HIGH), 0.0)
        return jnp.einsum('co,bo->bc', mlp_w2, h1, precision=HIGH)

    c_gap = mlp(jnp.mean(xs, axis=-1))
    gmp = jnp.max(xb, axis=-1)
    c_gmp = mlp(gmp)
    pi = jax.nn.softmax(xs, axis=-1)
    ent = -jnp.sum(pi * jnp.log(pi), axis=-1)
    emin = jnp.min(ent, axis=-1, keepdims=True)
    emax = jnp.max(ent, axis=-1, keepdims=True)
    c_gep = mlp((ent - emin) / (emax - emin))
    channel_score = jax.nn.sigmoid(c_gap * ca + c_gmp * cb + c_gep * cg)[:, :, None]

    s_gap = jnp.mean(xs, axis=1, keepdims=True)
    pic = jax.nn.softmax(xs, axis=1)
    s_gep = -jnp.sum(pic * jnp.log(pic), axis=1, keepdims=True)
    smn = jnp.min(s_gep, axis=-1, keepdims=True)
    smx = jnp.max(s_gep, axis=-1, keepdims=True)
    s_gep = (s_gep - smn) / (smx - smn)
    spre = -s_gap * sa + gmp[:, :, None] * sb + s_gep * sg          # (b, c, w)

    k = conv_w.shape[-1]
    cpad = k // 2
    spp = jnp.pad(spre, ((0, 0), (0, 0), (cpad, cpad)))
    conv = sum(jnp.einsum('oi,biw->bow', conv_w[:, :, j], spp[:, :, j:j + w],
                          precision=HIGH) for j in range(k))
    spatial_score = jax.nn.sigmoid(conv)

    cwt = jnp.exp(cwr) / (jnp.exp(cwr) + jnp.exp(swr))
    swt = jnp.exp(swr) / (jnp.exp(cwr) + jnp.exp(swr))
    scale = channel_score * cwt + spatial_score * swt
    return (scale * xs)[:, :, None, :]


if __name__ == "__main__":
    key = jax.random.PRNGKey(0)
    b, c, h, w = 8, 8, 1, 16
    reduction_rate = 2
    kernel_size = 5
    c_r = c // reduction_rate

    k_x, k_w1, k_w2, k_cw, k_p = jax.random.split(key, 5)
    x = jax.random.normal(k_x, (b, c, h, w), jnp.float32)

    # Deterministic synthetic parameters (shapes from the module's __init__):
    # mlp: Conv2d(c, c//r, 1) weight (c//r, c), Conv2d(c//r, c, 1) weight (c, c//r)
    mlp_w1 = jax.random.normal(k_w1, (c_r, c), jnp.float32) * (1.0 / math.sqrt(c))
    mlp_w2 = jax.random.normal(k_w2, (c, c_r), jnp.float32) * (1.0 / math.sqrt(c_r))
    # conv: Conv2d(c, c, (1,k)) weight (c, c, 1, k) -> squeeze -> (c, c, k)
    conv_w = jax.random.normal(k_cw, (c, c, kernel_size), jnp.float32) * (
        1.0 / math.sqrt(c * kernel_size))
    # [c_alpha, c_beta, c_gamma, s_alpha, s_beta, s_gamma, c_w, s_w]
    # (PyTorch inits these to zero; nonzero values make the test non-trivial.)
    scalar_params = jax.random.normal(k_p, (8,), jnp.float32) * 0.5

    gauss = _gaussian_kernel1d(5, 1.0)   # fixed, non-learnable gaussian taps

    out = cat_pallas(x, scalar_params, mlp_w1, mlp_w2, conv_w, gauss)
    out = jax.block_until_ready(out)

    # kernel uses bf16 MXU passes + approx reciprocal; reference is f32 HIGHEST,
    # so compare at bf16-level tolerance.
    ref = cat_reference(x, scalar_params, mlp_w1, mlp_w2, conv_w, gauss)
    np.testing.assert_allclose(np.asarray(out), np.asarray(ref), rtol=2e-2, atol=5e-3)

    print("KERNEL_OK")
</pallas_src>

<mosaic_0001>
module attributes {stable_mosaic.version = 11 : i64} {
  func.func @kernel(%arg0: i32, %arg1: memref<8xf32, #tpu.memory_space<smem>>, %arg2: memref<4x8x16xf32, #tpu.memory_space<vmem>>, %arg3: memref<4x8xbf16, #tpu.memory_space<vmem>>, %arg4: memref<8x4xbf16, #tpu.memory_space<vmem>>, %arg5: memref<8x40xbf16, #tpu.memory_space<vmem>>, %arg6: memref<4x8x16xf32, #tpu.memory_space<vmem>>, %arg7: memref<4x8x20xf32, #tpu.memory_space<vmem>>, %arg8: memref<8x12xf32, #tpu.memory_space<vmem>>) attributes {dimension_semantics = [#tpu.dimension_semantics<parallel>], iteration_bounds = array<i64: 2>, scalar_prefetch = 1 : i64, scratch_operands = 2 : i64, tpu.core_type = #tpu.core_type<tc>, window_params = [{transform_indices = @transform_0, window_bounds = array<i64: 4, 8, 16>}, {pipeline_mode = #tpu.pipeline_mode<synchronous>, transform_indices = @transform_1, window_bounds = array<i64: 4, 8>}, {pipeline_mode = #tpu.pipeline_mode<synchronous>, transform_indices = @transform_2, window_bounds = array<i64: 8, 4>}, {pipeline_mode = #tpu.pipeline_mode<synchronous>, transform_indices = @transform_3, window_bounds = array<i64: 8, 40>}, {transform_indices = @transform_4, window_bounds = array<i64: 4, 8, 16>}]} {
    %c0 = arith.constant 0 : index
    %c0_0 = arith.constant 0 : index
    %c0_1 = arith.constant 0 : index
    %0 = vector.load %arg2[%c0, %c0_0, %c0_1] : memref<4x8x16xf32, #tpu.memory_space<vmem>>, vector<4x8x16xf32>
    %cst = arith.constant 0.000000e+00 : f32
    %1 = vector.broadcast %cst : f32 to vector<4x8x2xf32>
    %c0_2 = arith.constant 0 : index
    %c0_3 = arith.constant 0 : index
    %c0_4 = arith.constant 0 : index
    %2 = vector.load %arg7[%c0_2, %c0_3, %c0_4] : memref<4x8x20xf32, #tpu.memory_space<vmem>>, vector<4x8x2xf32>
    tpu.vector_store %arg7[%c0_2, %c0_3, %c0_4], %1 {strides = array<i32>} : memref<4x8x20xf32, #tpu.memory_space<vmem>>, vector<4x8x2xf32>,
    %cst_5 = arith.constant 0.000000e+00 : f32
    %3 = vector.broadcast %cst_5 : f32 to vector<4x8x2xf32>
    %c0_6 = arith.constant 0 : index
    %c0_7 = arith.constant 0 : index
    %c18 = arith.constant 18 : index
    %4 = vector.load %arg7[%c0_6, %c0_7, %c18] : memref<4x8x20xf32, #tpu.memory_space<vmem>>, vector<4x8x2xf32>
    tpu.vector_store %arg7[%c0_6, %c0_7, %c18], %3 {strides = array<i32>} : memref<4x8x20xf32, #tpu.memory_space<vmem>>, vector<4x8x2xf32>,
    %c0_8 = arith.constant 0 : index
    %c0_9 = arith.constant 0 : index
    %c2 = arith.constant 2 : index
    %5 = vector.load %arg7[%c0_8, %c0_9, %c2] : memref<4x8x20xf32, #tpu.memory_space<vmem>>, vector<4x8x16xf32>
    tpu.vector_store %arg7[%c0_8, %c0_9, %c2], %0 {strides = array<i32>} : memref<4x8x20xf32, #tpu.memory_space<vmem>>, vector<4x8x16xf32>,
    %c0_10 = arith.constant 0 : index
    %c0_11 = arith.constant 0 : index
    %c0_12 = arith.constant 0 : index
    %6 = vector.load %arg7[%c0_10, %c0_11, %c0_12] : memref<4x8x20xf32, #tpu.memory_space<vmem>>, vector<4x8x16xf32>
    %cst_13 = arith.constant 0.054488685 : f32
    %7 = vector.broadcast %cst_13 : f32 to vector<4x8x16xf32>
    %8 = arith.mulf %7, %6 : vector<4x8x16xf32>
    %c0_14 = arith.constant 0 : index
    %c0_15 = arith.constant 0 : index
    %c1 = arith.constant 1 : index
    %9 = vector.load %arg7[%c0_14, %c0_15, %c1] : memref<4x8x20xf32, #tpu.memory_space<vmem>>, vector<4x8x16xf32>
    %cst_16 = arith.constant 0.244201347 : f32
    %10 = vector.broadcast %cst_16 : f32 to vector<4x8x16xf32>
    %11 = arith.mulf %10, %9 : vector<4x8x16xf32>
    %12 = arith.addf %8, %11 : vector<4x8x16xf32>
    %c0_17 = arith.constant 0 : index
    %c0_18 = arith.constant 0 : index
    %c2_19 = arith.constant 2 : index
    %13 = vector.load %arg7[%c0_17, %c0_18, %c2_19] : memref<4x8x20xf32, #tpu.memory_space<vmem>>, vector<4x8x16xf32>
    %cst_20 = arith.constant 0.402619958 : f32
    %14 = vector.broadcast %cst_20 : f32 to vector<4x8x16xf32>
    %15 = arith.mulf %14, %13 : vector<4x8x16xf32>
    %16 = arith.addf %12, %15 : vector<4x8x16xf32>
    %c0_21 = arith.constant 0 : index
    %c0_22 = arith.constant 0 : index
    %c3 = arith.constant 3 : index
    %17 = vector.load %arg7[%c0_21, %c0_22, %c3] : memref<4x8x20xf32, #tpu.memory_space<vmem>>, vector<4x8x16xf32>
    %cst_23 = arith.constant 0.244201347 : f32
    %18 = vector.broadcast %cst_23 : f32 to vector<4x8x16xf32>
    %19 = arith.mulf %18, %17 : vector<4x8x16xf32>
    %20 = arith.addf %16, %19 : vector<4x8x16xf32>
    %c0_24 = arith.constant 0 : index
    %c0_25 = arith.constant 0 : index
    %c4 = arith.constant 4 : index
    %21 = vector.load %arg7[%c0_24, %c0_25, %c4] : memref<4x8x20xf32, #tpu.memory_space<vmem>>, vector<4x8x16xf32>
    %cst_26 = arith.constant 0.054488685 : f32
    %22 = vector.broadcast %cst_26 : f32 to vector<4x8x16xf32>
    %23 = arith.mulf %22, %21 : vector<4x8x16xf32>
    %24 = arith.addf %20, %23 : vector<4x8x16xf32>
    %cst_27 = arith.constant dense<0xFF800000> : vector<4x8xf32>
    %25 = vector.multi_reduction <maximumf>, %24, %cst_27 [2] : vector<4x8x16xf32> to vector<4x8xf32>
    %26 = vector.shape_cast %25 : vector<4x8xf32> to vector<4x8x1xf32>
    %cst_28 = arith.constant dense<0.000000e+00> : vector<4x8xf32>
    %27 = vector.multi_reduction <add>, %0, %cst_28 [2] : vector<4x8x16xf32> to vector<4x8xf32>
    %28 = vector.shape_cast %27 : vector<4x8xf32> to vector<4x8x1xf32>
    %cst_29 = arith.constant 1.600000e+01 : f32
    %29 = vector.broadcast %cst_29 : f32 to vector<4x8x1xf32>
    %30 = arith.divf %28, %29 : vector<4x8x1xf32>
    %cst_30 = arith.constant dense<0xFF800000> : vector<4x8xf32>
    %31 = vector.multi_reduction <maximumf>, %0, %cst_30 [2] : vector<4x8x16xf32> to vector<4x8xf32>
    %32 = vector.shape_cast %31 : vector<4x8xf32> to vector<4x8x1xf32>
    %33 = vector.broadcast %32 : vector<4x8x1xf32> to vector<4x8x16xf32>
    %34 = arith.subf %0, %33 : vector<4x8x16xf32>
    %35 = math.exp %34 : vector<4x8x16xf32>
    %cst_31 = arith.constant dense<0.000000e+00> : vector<4x8xf32>
    %36 = vector.multi_reduction <add>, %35, %cst_31 [2] : vector<4x8x16xf32> to vector<4x8xf32>
    %37 = vector.shape_cast %36 : vector<4x8xf32> to vector<4x8x1xf32>
    %38 = arith.mulf %35, %34 : vector<4x8x16xf32>
    %cst_32 = arith.constant dense<0.000000e+00> : vector<4x8xf32>
    %39 = vector.multi_reduction <add>, %38, %cst_32 [2] : vector<4x8x16xf32> to vector<4x8xf32>
    %40 = vector.shape_cast %39 : vector<4x8xf32> to vector<4x8x1xf32>
    %41 = math.log %37 : vector<4x8x1xf32>
    %42 = tpu.reciprocal %37 {approx = true} : vector<4x8x1xf32> -> vector<4x8x1xf32>
    %43 = arith.mulf %40, %42 : vector<4x8x1xf32>
    %44 = arith.subf %41, %43 : vector<4x8x1xf32>
    %cst_33 = arith.constant dense<0x7F800000> : vector<4x1xf32>
    %45 = vector.multi_reduction <minimumf>, %44, %cst_33 [1] : vector<4x8x1xf32> to vector<4x1xf32>
    %46 = vector.shape_cast %45 : vector<4x1xf32> to vector<4x1x1xf32>
    %cst_34 = arith.constant dense<0xFF800000> : vector<4x1xf32>
    %47 = vector.multi_reduction <maximumf>, %44, %cst_34 [1] : vector<4x8x1xf32> to vector<4x1xf32>
    %48 = vector.shape_cast %47 : vector<4x1xf32> to vector<4x1x1xf32>
    %49 = vector.broadcast %46 : vector<4x1x1xf32> to vector<4x8x1xf32>
    %50 = arith.subf %44, %49 : vector<4x8x1xf32>
    %51 = arith.subf %48, %46 : vector<4x1x1xf32>
    %52 = vector.broadcast %51 : vector<4x1x1xf32> to vector<4x8x1xf32>
    %53 = arith.divf %50, %52 : vector<4x8x1xf32>
    %54 = vector.extract_strided_slice %30 {offsets = [0, 0, 0], sizes = [1, 8, 1], strides = [1, 1, 1]} : vector<4x8x1xf32> to vector<1x8x1xf32>
    %55 = vector.shape_cast %54 : vector<1x8x1xf32> to vector<8x1xf32>
    %c0_35 = arith.constant 0 : index
    %c0_36 = arith.constant 0 : index
    %56 = vector.load %arg8[%c0_35, %c0_36] : memref<8x12xf32, #tpu.memory_space<vmem>>, vector<8x1xf32>
    tpu.vector_store %arg8[%c0_35, %c0_36], %55 {strides = array<i32>} : memref<8x12xf32, #tpu.memory_space<vmem>>, vector<8x1xf32>,
    %57 = vector.extract_strided_slice %26 {offsets = [0, 0, 0], sizes = [1, 8, 1], strides = [1, 1, 1]} : vector<4x8x1xf32> to vector<1x8x1xf32>
    %58 = vector.shape_cast %57 : vector<1x8x1xf32> to vector<8x1xf32>
    %c0_37 = arith.constant 0 : index
    %c4_38 = arith.constant 4 : index
    %59 = vector.load %arg8[%c0_37, %c4_38] : memref<8x12xf32, #tpu.memory_space<vmem>>, vector<8x1xf32>
    tpu.vector_store %arg8[%c0_37, %c4_38], %58 {strides = array<i32>} : memref<8x12xf32, #tpu.memory_space<vmem>>, vector<8x1xf32>,
    %60 = vector.extract_strided_slice %53 {offsets = [0, 0, 0], sizes = [1, 8, 1], strides = [1, 1, 1]} : vector<4x8x1xf32> to vector<1x8x1xf32>
    %61 = vector.shape_cast %60 : vector<1x8x1xf32> to vector<8x1xf32>
    %c0_39 = arith.constant 0 : index
    %c8 = arith.constant 8 : index
    %62 = vector.load %arg8[%c0_39, %c8] : memref<8x12xf32, #tpu.memory_space<vmem>>, vector<8x1xf32>
    tpu.vector_store %arg8[%c0_39, %c8], %61 {strides = array<i32>} : memref<8x12xf32, #tpu.memory_space<vmem>>, vector<8x1xf32>,
    %63 = vector.extract_strided_slice %30 {offsets = [1, 0, 0], sizes = [1, 8, 1], strides = [1, 1, 1]} : vector<4x8x1xf32> to vector<1x8x1xf32>
    %64 = vector.shape_cast %63 : vector<1x8x1xf32> to vector<8x1xf32>
    %c0_40 = arith.constant 0 : index
    %c1_41 = arith.constant 1 : index
    %65 = vector.load %arg8[%c0_40, %c1_41] : memref<8x12xf32, #tpu.memory_space<vmem>>, vector<8x1xf32>
    tpu.vector_store %arg8[%c0_40, %c1_41], %64 {strides = array<i32>} : memref<8x12xf32, #tpu.memory_space<vmem>>, vector<8x1xf32>,
    %66 = vector.extract_strided_slice %26 {offsets = [1, 0, 0], sizes = [1, 8, 1], strides = [1, 1, 1]} : vector<4x8x1xf32> to vector<1x8x1xf32>
    %67 = vector.shape_cast %66 : vector<1x8x1xf32> to vector<8x1xf32>
    %c0_42 = arith.constant 0 : index
    %c5 = arith.constant 5 : index
    %68 = vector.load %arg8[%c0_42, %c5] : memref<8x12xf32, #tpu.memory_space<vmem>>, vector<8x1xf32>
    tpu.vector_store %arg8[%c0_42, %c5], %67 {strides = array<i32>} : memref<8x12xf32, #tpu.memory_space<vmem>>, vector<8x1xf32>,
    %69 = vector.extract_strided_slice %53 {offsets = [1, 0, 0], sizes = [1, 8, 1], strides = [1, 1, 1]} : vector<4x8x1xf32> to vector<1x8x1xf32>
    %70 = vector.shape_cast %69 : vector<1x8x1xf32> to vector<8x1xf32>
    %c0_43 = arith.constant 0 : index
    %c9 = arith.constant 9 : index
    %71 = vector.load %arg8[%c0_43, %c9] : memref<8x12xf32, #tpu.memory_space<vmem>>, vector<8x1xf32>
    tpu.vector_store %arg8[%c0_43, %c9], %70 {strides = array<i32>} : memref<8x12xf32, #tpu.memory_space<vmem>>, vector<8x1xf32>,
    %72 = vector.extract_strided_slice %30 {offsets = [2, 0, 0], sizes = [1, 8, 1], strides = [1, 1, 1]} : vector<4x8x1xf32> to vector<1x8x1xf32>
    %73 = vector.shape_cast %72 : vector<1x8x1xf32> to vector<8x1xf32>
    %c0_44 = arith.constant 0 : index
    %c2_45 = arith.constant 2 : index
    %74 = vector.load %arg8[%c0_44, %c2_45] : memref<8x12xf32, #tpu.memory_space<vmem>>, vector<8x1xf32>
    tpu.vector_store %arg8[%c0_44, %c2_45], %73 {strides = array<i32>} : memref<8x12xf32, #tpu.memory_space<vmem>>, vector<8x1xf32>,
    %75 = vector.extract_strided_slice %26 {offsets = [2, 0, 0], sizes = [1, 8, 1], strides = [1, 1, 1]} : vector<4x8x1xf32> to vector<1x8x1xf32>
    %76 = vector.shape_cast %75 : vector<1x8x1xf32> to vector<8x1xf32>
    %c0_46 = arith.constant 0 : index
    %c6 = arith.constant 6 : index
    %77 = vector.load %arg8[%c0_46, %c6] : memref<8x12xf32, #tpu.memory_space<vmem>>, vector<8x1xf32>
    tpu.vector_store %arg8[%c0_46, %c6], %76 {strides = array<i32>} : memref<8x12xf32, #tpu.memory_space<vmem>>, vector<8x1xf32>,
    %78 = vector.extract_strided_slice %53 {offsets = [2, 0, 0], sizes = [1, 8, 1], strides = [1, 1, 1]} : vector<4x8x1xf32> to vector<1x8x1xf32>
    %79 = vector.shape_cast %78 : vector<1x8x1xf32> to vector<8x1xf32>
    %c0_47 = arith.constant 0 : index
    %c10 = arith.constant 10 : index
    %80 = vector.load %arg8[%c0_47, %c10] : memref<8x12xf32, #tpu.memory_space<vmem>>, vector<8x1xf32>
    tpu.vector_store %arg8[%c0_47, %c10], %79 {strides = array<i32>} : memref<8x12xf32, #tpu.memory_space<vmem>>, vector<8x1xf32>,
    %81 = vector.extract_strided_slice %30 {offsets = [3, 0, 0], sizes = [1, 8, 1], strides = [1, 1, 1]} : vector<4x8x1xf32> to vector<1x8x1xf32>
    %82 = vector.shape_cast %81 : vector<1x8x1xf32> to vector<8x1xf32>
    %c0_48 = arith.constant 0 : index
    %c3_49 = arith.constant 3 : index
    %83 = vector.load %arg8[%c0_48, %c3_49] : memref<8x12xf32, #tpu.memory_space<vmem>>, vector<8x1xf32>
    tpu.vector_store %arg8[%c0_48, %c3_49], %82 {strides = array<i32>} : memref<8x12xf32, #tpu.memory_space<vmem>>, vector<8x1xf32>,
    %84 = vector.extract_strided_slice %26 {offsets = [3, 0, 0], sizes = [1, 8, 1], strides = [1, 1, 1]} : vector<4x8x1xf32> to vector<1x8x1xf32>
    %85 = vector.shape_cast %84 : vector<1x8x1xf32> to vector<8x1xf32>
    %c0_50 = arith.constant 0 : index
    %c7 = arith.constant 7 : index
    %86 = vector.load %arg8[%c0_50, %c7] : memref<8x12xf32, #tpu.memory_space<vmem>>, vector<8x1xf32>
    tpu.vector_store %arg8[%c0_50, %c7], %85 {strides = array<i32>} : memref<8x12xf32, #tpu.memory_space<vmem>>, vector<8x1xf32>,
    %87 = vector.extract_strided_slice %53 {offsets = [3, 0, 0], sizes = [1, 8, 1], strides = [1, 1, 1]} : vector<4x8x1xf32> to vector<1x8x1xf32>
    %88 = vector.shape_cast %87 : vector<1x8x1xf32> to vector<8x1xf32>
    %c0_51 = arith.constant 0 : index
    %c11 = arith.constant 11 : index
    %89 = vector.load %arg8[%c0_51, %c11] : memref<8x12xf32, #tpu.memory_space<vmem>>, vector<8x1xf32>
    tpu.vector_store %arg8[%c0_51, %c11], %88 {strides = array<i32>} : memref<8x12xf32, #tpu.memory_space<vmem>>, vector<8x1xf32>,
    %c0_52 = arith.constant 0 : index
    %c0_53 = arith.constant 0 : index
    %90 = vector.load %arg8[%c0_52, %c0_53] : memref<8x12xf32, #tpu.memory_space<vmem>>, vector<8x12xf32>
    %91 = arith.truncf %90 : vector<8x12xf32> to vector<8x12xbf16>
    %c0_54 = arith.constant 0 : index
    %c0_55 = arith.constant 0 : index
    %92 = vector.load %arg3[%c0_54, %c0_55] : memref<4x8xbf16, #tpu.memory_space<vmem>>, vector<4x8xbf16>
    %cst_56 = arith.constant dense<0.000000e+00> : vector<4x12xf32>
    %93 = tpu.matmul %92, %91, %cst_56 {dimension_numbers = #tpu.dot_dimension_numbers<[1], [0], [0], [1], [0, 0, 1, 1], [], []>} : vector<4x8xbf16>, vector<8x12xbf16>, vector<4x12xf32> -> vector<4x12xf32>
    %cst_57 = arith.constant 0.000000e+00 : f32
    %94 = vector.broadcast %cst_57 : f32 to vector<4x12xf32>
    %95 = arith.maximumf %93, %94 : vector<4x12xf32>
    %c0_58 = arith.constant 0 : index
    %c0_59 = arith.constant 0 : index
    %96 = vector.load %arg4[%c0_58, %c0_59] : memref<8x4xbf16, #tpu.memory_space<vmem>>, vector<8x4xbf16>
    %97 = arith.truncf %95 : vector<4x12xf32> to vector<4x12xbf16>
    %cst_60 = arith.constant dense<0.000000e+00> : vector<8x12xf32>
    %98 = tpu.matmul %96, %97, %cst_60 {dimension_numbers = #tpu.dot_dimension_numbers<[1], [0], [0], [1], [0, 0, 1, 1], [], []>} : vector<8x4xbf16>, vector<4x12xbf16>, vector<8x12xf32> -> vector<8x12xf32>
    %c0_61 = arith.constant 0 : index
    %99 = memref.load %arg1[%c0_61] : memref<8xf32, #tpu.memory_space<smem>>
    %100 = vector.extract_strided_slice %98 {offsets = [0, 0], sizes = [8, 4], strides = [1, 1]} : vector<8x12xf32> to vector<8x4xf32>
    %101 = vector.broadcast %99 : f32 to vector<8x4xf32>
    %102 = arith.mulf %101, %100 : vector<8x4xf32>
    %c1_62 = arith.constant 1 : index
    %103 = memref.load %arg1[%c1_62] : memref<8xf32, #tpu.memory_space<smem>>
    %104 = vector.extract_strided_slice %98 {offsets = [0, 4], sizes = [8, 4], strides = [1, 1]} : vector<8x12xf32> to vector<8x4xf32>
    %105 = vector.broadcast %103 : f32 to vector<8x4xf32>
    %106 = arith.mulf %105, %104 : vector<8x4xf32>
    %107 = arith.addf %102, %106 : vector<8x4xf32>
    %c2_63 = arith.constant 2 : index
    %108 = memref.load %arg1[%c2_63] : memref<8xf32, #tpu.memory_space<smem>>
    %109 = vector.extract_strided_slice %98 {offsets = [0, 8], sizes = [8, 4], strides = [1, 1]} : vector<8x12xf32> to vector<8x4xf32>
    %110 = vector.broadcast %108 : f32 to vector<8x4xf32>
    %111 = arith.mulf %110, %109 : vector<8x4xf32>
    %112 = arith.addf %107, %111 : vector<8x4xf32>
    %113 = arith.negf %112 : vector<8x4xf32>
    %114 = math.exp %113 : vector<8x4xf32>
    %cst_64 = arith.constant 1.000000e+00 : f32
    %115 = vector.broadcast %cst_64 : f32 to vector<8x4xf32>
    %116 = arith.addf %115, %114 : vector<8x4xf32>
    %117 = arith.divf %115, %116 : vector<8x4xf32>
    %cst_65 = arith.constant dense<0.000000e+00> : vector<4x16xf32>
    %118 = vector.multi_reduction <add>, %0, %cst_65 [1] : vector<4x8x16xf32> to vector<4x16xf32>
    %119 = vector.shape_cast %118 : vector<4x16xf32> to vector<4x1x16xf32>
    %cst_66 = arith.constant 8.000000e+00 : f32
    %120 = vector.broadcast %cst_66 : f32 to vector<4x1x16xf32>
    %121 = arith.divf %119, %120 : vector<4x1x16xf32>
    %cst_67 = arith.constant dense<0xFF800000> : vector<4x16xf32>
    %122 = vector.multi_reduction <maximumf>, %0, %cst_67 [1] : vector<4x8x16xf32> to vector<4x16xf32>
    %123 = vector.shape_cast %122 : vector<4x16xf32> to vector<4x1x16xf32>
    %124 = vector.broadcast %123 : vector<4x1x16xf32> to vector<4x8x16xf32>
    %125 = arith.subf %0, %124 : vector<4x8x16xf32>
    %126 = math.exp %125 : vector<4x8x16xf32>
    %cst_68 = arith.constant dense<0.000000e+00> : vector<4x16xf32>
    %127 = vector.multi_reduction <add>, %126, %cst_68 [1] : vector<4x8x16xf32> to vector<4x16xf32>
    %128 = vector.shape_cast %127 : vector<4x16xf32> to vector<4x1x16xf32>
    %129 = arith.mulf %126, %125 : vector<4x8x16xf32>
    %cst_69 = arith.constant dense<0.000000e+00> : vector<4x16xf32>
    %130 = vector.multi_reduction <add>, %129, %cst_69 [1] : vector<4x8x16xf32> to vector<4x16xf32>
    %131 = vector.shape_cast %130 : vector<4x16xf32> to vector<4x1x16xf32>
    %132 = math.log %128 : vector<4x1x16xf32>
    %133 = tpu.reciprocal %128 {approx = true} : vector<4x1x16xf32> -> vector<4x1x16xf32>
    %134 = arith.mulf %131, %133 : vector<4x1x16xf32>
    %135 = arith.subf %132, %134 : vector<4x1x16xf32>
    %cst_70 = arith.constant dense<0x7F800000> : vector<4x1xf32>
    %136 = vector.multi_reduction <minimumf>, %135, %cst_70 [2] : vector<4x1x16xf32> to vector<4x1xf32>
    %137 = vector.shape_cast %136 : vector<4x1xf32> to vector<4x1x1xf32>
    %cst_71 = arith.constant dense<0xFF800000> : vector<4x1xf32>
    %138 = vector.multi_reduction <maximumf>, %135, %cst_71 [2] : vector<4x1x16xf32> to vector<4x1xf32>
    %139 = vector.shape_cast %138 : vector<4x1xf32> to vector<4x1x1xf32>
    %140 = vector.broadcast %137 : vector<4x1x1xf32> to vector<4x1x16xf32>
    %141 = arith.subf %135, %140 : vector<4x1x16xf32>
    %142 = arith.subf %139, %137 : vector<4x1x1xf32>
    %143 = vector.broadcast %142 : vector<4x1x1xf32> to vector<4x1x16xf32>
    %144 = arith.divf %141, %143 : vector<4x1x16xf32>
    %cst_72 = arith.constant 0.000000e+00 : f32
    %145 = vector.broadcast %cst_72 : f32 to vector<4x1x16xf32>
    %146 = arith.subf %145, %121 : vector<4x1x16xf32>
    %c3_73 = arith.constant 3 : index
    %147 = memref.load %arg1[%c3_73] : memref<8xf32, #tpu.memory_space<smem>>
    %148 = vector.broadcast %147 : f32 to vector<4x1x16xf32>
    %149 = arith.mulf %146, %148 : vector<4x1x16xf32>
    %c4_74 = arith.constant 4 : index
    %150 = memref.load %arg1[%c4_74] : memref<8xf32, #tpu.memory_space<smem>>
    %151 = vector.broadcast %150 : f32 to vector<4x8x1xf32>
    %152 = arith.mulf %26, %151 : vector<4x8x1xf32>
    %153 = vector.broadcast %149 : vector<4x1x16xf32> to vector<4x8x16xf32>
    %154 = vector.broadcast %152 : vector<4x8x1xf32> to vector<4x8x16xf32>
    %155 = arith.addf %153, %154 : vector<4x8x16xf32>
    %c5_75 = arith.constant 5 : index
    %156 = memref.load %arg1[%c5_75] : memref<8xf32, #tpu.memory_space<smem>>
    %157 = vector.broadcast %156 : f32 to vector<4x1x16xf32>
    %158 = arith.mulf %144, %157 : vector<4x1x16xf32>
    %159 = vector.broadcast %158 : vector<4x1x16xf32> to vector<4x8x16xf32>
    %160 = arith.addf %155, %159 : vector<4x8x16xf32>
    %cst_76 = arith.constant 0.000000e+00 : f32
    %161 = vector.broadcast %cst_76 : f32 to vector<4x8x2xf32>
    %c0_77 = arith.constant 0 : index
    %c0_78 = arith.constant 0 : index
    %c0_79 = arith.constant 0 : index
    %162 = vector.load %arg7[%c0_77, %c0_78, %c0_79] : memref<4x8x20xf32, #tpu.memory_space<vmem>>, vector<4x8x2xf32>
    tpu.vector_store %arg7[%c0_77, %c0_78, %c0_79], %161 {strides = array<i32>} : memref<4x8x20xf32, #tpu.memory_space<vmem>>, vector<4x8x2xf32>,
    %cst_80 = arith.constant 0.000000e+00 : f32
    %163 = vector.broadcast %cst_80 : f32 to vector<4x8x2xf32>
    %c0_81 = arith.constant 0 : index
    %c0_82 = arith.constant 0 : index
    %c18_83 = arith.constant 18 : index
    %164 = vector.load %arg7[%c0_81, %c0_82, %c18_83] : memref<4x8x20xf32, #tpu.memory_space<vmem>>, vector<4x8x2xf32>
    tpu.vector_store %arg7[%c0_81, %c0_82, %c18_83], %163 {strides = array<i32>} : memref<4x8x20xf32, #tpu.memory_space<vmem>>, vector<4x8x2xf32>,
    %c0_84 = arith.constant 0 : index
    %c0_85 = arith.constant 0 : index
    %c2_86 = arith.constant 2 : index
    %165 = vector.load %arg7[%c0_84, %c0_85, %c2_86] : memref<4x8x20xf32, #tpu.memory_space<vmem>>, vector<4x8x16xf32>
    tpu.vector_store %arg7[%c0_84, %c0_85, %c2_86], %160 {strides = array<i32>} : memref<4x8x20xf32, #tpu.memory_space<vmem>>, vector<4x8x16xf32>,
    %c0_87 = arith.constant 0 : index
    %c0_88 = arith.constant 0 : index
    %166 = vector.load %arg5[%c0_87, %c0_88] : memref<8x40xbf16, #tpu.memory_space<vmem>>, vector<8x40xbf16>
    %c6_89 = arith.constant 6 : index
    %167 = memref.load %arg1[%c6_89] : memref<8xf32, #tpu.memory_space<smem>>
    %c7_90 = arith.constant 7 : index
    %168 = memref.load %arg1[%c7_90] : memref<8xf32, #tpu.memory_space<smem>>
    %c0_91 = arith.constant 0 : index
    %c0_92 = arith.constant 0 : index
    %c0_93 = arith.constant 0 : index
    %169 = vector.load %arg7[%c0_91, %c0_92, %c0_93] : memref<4x8x20xf32, #tpu.memory_space<vmem>>, vector<1x8x16xf32>
    %170 = vector.shape_cast %169 : vector<1x8x16xf32> to vector<8x16xf32>
    %c0_94 = arith.constant 0 : index
    %c0_95 = arith.constant 0 : index
    %c1_96 = arith.constant 1 : index
    %171 = vector.load %arg7[%c0_94, %c0_95, %c1_96] : memref<4x8x20xf32, #tpu.memory_space<vmem>>, vector<1x8x16xf32>
    %172 = vector.shape_cast %171 : vector<1x8x16xf32> to vector<8x16xf32>
    %c0_97 = arith.constant 0 : index
    %c0_98 = arith.constant 0 : index
    %c2_99 = arith.constant 2 : index
    %173 = vector.load %arg7[%c0_97, %c0_98, %c2_99] : memref<4x8x20xf32, #tpu.memory_space<vmem>>, vector<1x8x16xf32>
    %174 = vector.shape_cast %173 : vector<1x8x16xf32> to vector<8x16xf32>
    %c0_100 = arith.constant 0 : index
    %c0_101 = arith.constant 0 : index
    %c3_102 = arith.constant 3 : index
    %175 = vector.load %arg7[%c0_100, %c0_101, %c3_102] : memref<4x8x20xf32, #tpu.memory_space<vmem>>, vector<1x8x16xf32>
    %176 = vector.shape_cast %175 : vector<1x8x16xf32> to vector<8x16xf32>
    %c0_103 = arith.constant 0 : index
    %c0_104 = arith.constant 0 : index
    %c4_105 = arith.constant 4 : index
    %177 = vector.load %arg7[%c0_103, %c0_104, %c4_105] : memref<4x8x20xf32, #tpu.memory_space<vmem>>, vector<1x8x16xf32>
    %178 = vector.shape_cast %177 : vector<1x8x16xf32> to vector<8x16xf32>
    %179 = tpu.concatenate %170, %172, %174, %176, %178 in 0 : vector<8x16xf32>, vector<8x16xf32>, vector<8x16xf32>, vector<8x16xf32>, vector<8x16xf32> -> vector<40x16xf32>
    %180 = arith.truncf %179 : vector<40x16xf32> to vector<40x16xbf16>
    %cst_106 = arith.constant dense<0.000000e+00> : vector<8x16xf32>
    %181 = tpu.matmul %166, %180, %cst_106 {dimension_numbers = #tpu.dot_dimension_numbers<[1], [0], [0], [1], [0, 0, 1, 1], [], []>} : vector<8x40xbf16>, vector<40x16xbf16>, vector<8x16xf32> -> vector<8x16xf32>
    %182 = vector.extract_strided_slice %117 {offsets = [0, 0], sizes = [8, 1], strides = [1, 1]} : vector<8x4xf32> to vector<8x1xf32>
    %183 = vector.broadcast %167 : f32 to vector<8x1xf32>
    %184 = arith.mulf %182, %183 : vector<8x1xf32>
    %185 = arith.negf %181 : vector<8x16xf32>
    %186 = math.exp %185 : vector<8x16xf32>
    %cst_107 = arith.constant 1.000000e+00 : f32
    %187 = vector.broadcast %cst_107 : f32 to vector<8x16xf32>
    %188 = arith.addf %187, %186 : vector<8x16xf32>
    %189 = arith.divf %187, %188 : vector<8x16xf32>
    %190 = vector.broadcast %168 : f32 to vector<8x16xf32>
    %191 = arith.mulf %189, %190 : vector<8x16xf32>
    %192 = vector.broadcast %184 : vector<8x1xf32> to vector<8x16xf32>
    %193 = arith.addf %192, %191 : vector<8x16xf32>
    %194 = vector.extract_strided_slice %0 {offsets = [0, 0, 0], sizes = [1, 8, 16], strides = [1, 1, 1]} : vector<4x8x16xf32> to vector<1x8x16xf32>
    %195 = vector.shape_cast %194 : vector<1x8x16xf32> to vector<8x16xf32>
    %196 = arith.mulf %193, %195 : vector<8x16xf32>
    %c0_108 = arith.constant 0 : index
    %c0_109 = arith.constant 0 : index
    %c0_110 = arith.constant 0 : index
    %197 = vector.load %arg6[%c0_108, %c0_109, %c0_110] : memref<4x8x16xf32, #tpu.memory_space<vmem>>, vector<1x8x16xf32>
    %198 = vector.shape_cast %197 : vector<1x8x16xf32> to vector<8x16xf32>
    %199 = vector.shape_cast %196 : vector<8x16xf32> to vector<1x8x16xf32>
    tpu.vector_store %arg6[%c0_108, %c0_109, %c0_110], %199 {strides = array<i32>} : memref<4x8x16xf32, #tpu.memory_space<vmem>>, vector<1x8x16xf32>,
    %c1_111 = arith.constant 1 : index
    %c0_112 = arith.constant 0 : index
    %c0_113 = arith.constant 0 : index
    %200 = vector.load %arg7[%c1_111, %c0_112, %c0_113] : memref<4x8x20xf32, #tpu.memory_space<vmem>>, vector<1x8x16xf32>
    %201 = vector.shape_cast %200 : vector<1x8x16xf32> to vector<8x16xf32>
    %c1_114 = arith.constant 1 : index
    %c0_115 = arith.constant 0 : index
    %c1_116 = arith.constant 1 : index
    %202 = vector.load %arg7[%c1_114, %c0_115, %c1_116] : memref<4x8x20xf32, #tpu.memory_space<vmem>>, vector<1x8x16xf32>
    %203 = vector.shape_cast %202 : vector<1x8x16xf32> to vector<8x16xf32>
    %c1_117 = arith.constant 1 : index
    %c0_118 = arith.constant 0 : index
    %c2_119 = arith.constant 2 : index
    %204 = vector.load %arg7[%c1_117, %c0_118, %c2_119] : memref<4x8x20xf32, #tpu.memory_space<vmem>>, vector<1x8x16xf32>
    %205 = vector.shape_cast %204 : vector<1x8x16xf32> to vector<8x16xf32>
    %c1_120 = arith.constant 1 : index
    %c0_121 = arith.constant 0 : index
    %c3_122 = arith.constant 3 : index
    %206 = vector.load %arg7[%c1_120, %c0_121, %c3_122] : memref<4x8x20xf32, #tpu.memory_space<vmem>>, vector<1x8x16xf32>
    %207 = vector.shape_cast %206 : vector<1x8x16xf32> to vector<8x16xf32>
    %c1_123 = arith.constant 1 : index
    %c0_124 = arith.constant 0 : index
    %c4_125 = arith.constant 4 : index
    %208 = vector.load %arg7[%c1_123, %c0_124, %c4_125] : memref<4x8x20xf32, #tpu.memory_space<vmem>>, vector<1x8x16xf32>
    %209 = vector.shape_cast %208 : vector<1x8x16xf32> to vector<8x16xf32>
    %210 = tpu.concatenate %201, %203, %205, %207, %209 in 0 : vector<8x16xf32>, vector<8x16xf32>, vector<8x16xf32>, vector<8x16xf32>, vector<8x16xf32> -> vector<40x16xf32>
    %211 = arith.truncf %210 : vector<40x16xf32> to vector<40x16xbf16>
    %cst_126 = arith.constant dense<0.000000e+00> : vector<8x16xf32>
    %212 = tpu.matmul %166, %211, %cst_126 {dimension_numbers = #tpu.dot_dimension_numbers<[1], [0], [0], [1], [0, 0, 1, 1], [], []>} : vector<8x40xbf16>, vector<40x16xbf16>, vector<8x16xf32> -> vector<8x16xf32>
    %213 = vector.extract_strided_slice %117 {offsets = [0, 1], sizes = [8, 1], strides = [1, 1]} : vector<8x4xf32> to vector<8x1xf32>
    %214 = vector.broadcast %167 : f32 to vector<8x1xf32>
    %215 = arith.mulf %213, %214 : vector<8x1xf32>
    %216 = arith.negf %212 : vector<8x16xf32>
    %217 = math.exp %216 : vector<8x16xf32>
    %cst_127 = arith.constant 1.000000e+00 : f32
    %218 = vector.broadcast %cst_127 : f32 to vector<8x16xf32>
    %219 = arith.addf %218, %217 : vector<8x16xf32>
    %220 = arith.divf %218, %219 : vector<8x16xf32>
    %221 = vector.broadcast %168 : f32 to vector<8x16xf32>
    %222 = arith.mulf %220, %221 : vector<8x16xf32>
    %223 = vector.broadcast %215 : vector<8x1xf32> to vector<8x16xf32>
    %224 = arith.addf %223, %222 : vector<8x16xf32>
    %225 = vector.extract_strided_slice %0 {offsets = [1, 0, 0], sizes = [1, 8, 16], strides = [1, 1, 1]} : vector<4x8x16xf32> to vector<1x8x16xf32>
    %226 = vector.shape_cast %225 : vector<1x8x16xf32> to vector<8x16xf32>
    %227 = arith.mulf %224, %226 : vector<8x16xf32>
    %c1_128 = arith.constant 1 : index
    %c0_129 = arith.constant 0 : index
    %c0_130 = arith.constant 0 : index
    %228 = vector.load %arg6[%c1_128, %c0_129, %c0_130] : memref<4x8x16xf32, #tpu.memory_space<vmem>>, vector<1x8x16xf32>
    %229 = vector.shape_cast %228 : vector<1x8x16xf32> to vector<8x16xf32>
    %230 = vector.shape_cast %227 : vector<8x16xf32> to vector<1x8x16xf32>
    tpu.vector_store %arg6[%c1_128, %c0_129, %c0_130], %230 {strides = array<i32>} : memref<4x8x16xf32, #tpu.memory_space<vmem>>, vector<1x8x16xf32>,
    %c2_131 = arith.constant 2 : index
    %c0_132 = arith.constant 0 : index
    %c0_133 = arith.constant 0 : index
    %231 = vector.load %arg7[%c2_131, %c0_132, %c0_133] : memref<4x8x20xf32, #tpu.memory_space<vmem>>, vector<1x8x16xf32>
    %232 = vector.shape_cast %231 : vector<1x8x16xf32> to vector<8x16xf32>
    %c2_134 = arith.constant 2 : index
    %c0_135 = arith.constant 0 : index
    %c1_136 = arith.constant 1 : index
    %233 = vector.load %arg7[%c2_134, %c0_135, %c1_136] : memref<4x8x20xf32, #tpu.memory_space<vmem>>, vector<1x8x16xf32>
    %234 = vector.shape_cast %233 : vector<1x8x16xf32> to vector<8x16xf32>
    %c2_137 = arith.constant 2 : index
    %c0_138 = arith.constant 0 : index
    %c2_139 = arith.constant 2 : index
    %235 = vector.load %arg7[%c2_137, %c0_138, %c2_139] : memref<4x8x20xf32, #tpu.memory_space<vmem>>, vector<1x8x16xf32>
    %236 = vector.shape_cast %235 : vector<1x8x16xf32> to vector<8x16xf32>
    %c2_140 = arith.constant 2 : index
    %c0_141 = arith.constant 0 : index
    %c3_142 = arith.constant 3 : index
    %237 = vector.load %arg7[%c2_140, %c0_141, %c3_142] : memref<4x8x20xf32, #tpu.memory_space<vmem>>, vector<1x8x16xf32>
    %238 = vector.shape_cast %237 : vector<1x8x16xf32> to vector<8x16xf32>
    %c2_143 = arith.constant 2 : index
    %c0_144 = arith.constant 0 : index
    %c4_145 = arith.constant 4 : index
    %239 = vector.load %arg7[%c2_143, %c0_144, %c4_145] : memref<4x8x20xf32, #tpu.memory_space<vmem>>, vector<1x8x16xf32>
    %240 = vector.shape_cast %239 : vector<1x8x16xf32> to vector<8x16xf32>
    %241 = tpu.concatenate %232, %234, %236, %238, %240 in 0 : vector<8x16xf32>, vector<8x16xf32>, vector<8x16xf32>, vector<8x16xf32>, vector<8x16xf32> -> vector<40x16xf32>
    %242 = arith.truncf %241 : vector<40x16xf32> to vector<40x16xbf16>
    %cst_146 = arith.constant dense<0.000000e+00> : vector<8x16xf32>
    %243 = tpu.matmul %166, %242, %cst_146 {dimension_numbers = #tpu.dot_dimension_numbers<[1], [0], [0], [1], [0, 0, 1, 1], [], []>} : vector<8x40xbf16>, vector<40x16xbf16>, vector<8x16xf32> -> vector<8x16xf32>
    %244 = vector.extract_strided_slice %117 {offsets = [0, 2], sizes = [8, 1], strides = [1, 1]} : vector<8x4xf32> to vector<8x1xf32>
    %245 = vector.broadcast %167 : f32 to vector<8x1xf32>
    %246 = arith.mulf %244, %245 : vector<8x1xf32>
    %247 = arith.negf %243 : vector<8x16xf32>
    %248 = math.exp %247 : vector<8x16xf32>
    %cst_147 = arith.constant 1.000000e+00 : f32
    %249 = vector.broadcast %cst_147 : f32 to vector<8x16xf32>
    %250 = arith.addf %249, %248 : vector<8x16xf32>
    %251 = arith.divf %249, %250 : vector<8x16xf32>
    %252 = vector.broadcast %168 : f32 to vector<8x16xf32>
    %253 = arith.mulf %251, %252 : vector<8x16xf32>
    %254 = vector.broadcast %246 : vector<8x1xf32> to vector<8x16xf32>
    %255 = arith.addf %254, %253 : vector<8x16xf32>
    %256 = vector.extract_strided_slice %0 {offsets = [2, 0, 0], sizes = [1, 8, 16], strides = [1, 1, 1]} : vector<4x8x16xf32> to vector<1x8x16xf32>
    %257 = vector.shape_cast %256 : vector<1x8x16xf32> to vector<8x16xf32>
    %258 = arith.mulf %255, %257 : vector<8x16xf32>
    %c2_148 = arith.constant 2 : index
    %c0_149 = arith.constant 0 : index
    %c0_150 = arith.constant 0 : index
    %259 = vector.load %arg6[%c2_148, %c0_149, %c0_150] : memref<4x8x16xf32, #tpu.memory_space<vmem>>, vector<1x8x16xf32>
    %260 = vector.shape_cast %259 : vector<1x8x16xf32> to vector<8x16xf32>
    %261 = vector.shape_cast %258 : vector<8x16xf32> to vector<1x8x16xf32>
    tpu.vector_store %arg6[%c2_148, %c0_149, %c0_150], %261 {strides = array<i32>} : memref<4x8x16xf32, #tpu.memory_space<vmem>>, vector<1x8x16xf32>,
    %c3_151 = arith.constant 3 : index
    %c0_152 = arith.constant 0 : index
    %c0_153 = arith.constant 0 : index
    %262 = vector.load %arg7[%c3_151, %c0_152, %c0_153] : memref<4x8x20xf32, #tpu.memory_space<vmem>>, vector<1x8x16xf32>
    %263 = vector.shape_cast %262 : vector<1x8x16xf32> to vector<8x16xf32>
    %c3_154 = arith.constant 3 : index
    %c0_155 = arith.constant 0 : index
    %c1_156 = arith.constant 1 : index
    %264 = vector.load %arg7[%c3_154, %c0_155, %c1_156] : memref<4x8x20xf32, #tpu.memory_space<vmem>>, vector<1x8x16xf32>
    %265 = vector.shape_cast %264 : vector<1x8x16xf32> to vector<8x16xf32>
    %c3_157 = arith.constant 3 : index
    %c0_158 = arith.constant 0 : index
    %c2_159 = arith.constant 2 : index
    %266 = vector.load %arg7[%c3_157, %c0_158, %c2_159] : memref<4x8x20xf32, #tpu.memory_space<vmem>>, vector<1x8x16xf32>
    %267 = vector.shape_cast %266 : vector<1x8x16xf32> to vector<8x16xf32>
    %c3_160 = arith.constant 3 : index
    %c0_161 = arith.constant 0 : index
    %c3_162 = arith.constant 3 : index
    %268 = vector.load %arg7[%c3_160, %c0_161, %c3_162] : memref<4x8x20xf32, #tpu.memory_space<vmem>>, vector<1x8x16xf32>
    %269 = vector.shape_cast %268 : vector<1x8x16xf32> to vector<8x16xf32>
    %c3_163 = arith.constant 3 : index
    %c0_164 = arith.constant 0 : index
    %c4_165 = arith.constant 4 : index
    %270 = vector.load %arg7[%c3_163, %c0_164, %c4_165] : memref<4x8x20xf32, #tpu.memory_space<vmem>>, vector<1x8x16xf32>
    %271 = vector.shape_cast %270 : vector<1x8x16xf32> to vector<8x16xf32>
    %272 = tpu.concatenate %263, %265, %267, %269, %271 in 0 : vector<8x16xf32>, vector<8x16xf32>, vector<8x16xf32>, vector<8x16xf32>, vector<8x16xf32> -> vector<40x16xf32>
    %273 = arith.truncf %272 : vector<40x16xf32> to vector<40x16xbf16>
    %cst_166 = arith.constant dense<0.000000e+00> : vector<8x16xf32>
    %274 = tpu.matmul %166, %273, %cst_166 {dimension_numbers = #tpu.dot_dimension_numbers<[1], [0], [0], [1], [0, 0, 1, 1], [], []>} : vector<8x40xbf16>, vector<40x16xbf16>, vector<8x16xf32> -> vector<8x16xf32>
    %275 = vector.extract_strided_slice %117 {offsets = [0, 3], sizes = [8, 1], strides = [1, 1]} : vector<8x4xf32> to vector<8x1xf32>
    %276 = vector.broadcast %167 : f32 to vector<8x1xf32>
    %277 = arith.mulf %275, %276 : vector<8x1xf32>
    %278 = arith.negf %274 : vector<8x16xf32>
    %279 = math.exp %278 : vector<8x16xf32>
    %cst_167 = arith.constant 1.000000e+00 : f32
    %280 = vector.broadcast %cst_167 : f32 to vector<8x16xf32>
    %281 = arith.addf %280, %279 : vector<8x16xf32>
    %282 = arith.divf %280, %281 : vector<8x16xf32>
    %283 = vector.broadcast %168 : f32 to vector<8x16xf32>
    %284 = arith.mulf %282, %283 : vector<8x16xf32>
    %285 = vector.broadcast %277 : vector<8x1xf32> to vector<8x16xf32>
    %286 = arith.addf %285, %284 : vector<8x16xf32>
    %287 = vector.extract_strided_slice %0 {offsets = [3, 0, 0], sizes = [1, 8, 16], strides = [1, 1, 1]} : vector<4x8x16xf32> to vector<1x8x16xf32>
    %288 = vector.shape_cast %287 : vector<1x8x16xf32> to vector<8x16xf32>
    %289 = arith.mulf %286, %288 : vector<8x16xf32>
    %c3_168 = arith.constant 3 : index
    %c0_169 = arith.constant 0 : index
    %c0_170 = arith.constant 0 : index
    %290 = vector.load %arg6[%c3_168, %c0_169, %c0_170] : memref<4x8x16xf32, #tpu.memory_space<vmem>>, vector<1x8x16xf32>
    %291 = vector.shape_cast %290 : vector<1x8x16xf32> to vector<8x16xf32>
    %292 = vector.shape_cast %289 : vector<8x16xf32> to vector<1x8x16xf32>
    tpu.vector_store %arg6[%c3_168, %c0_169, %c0_170], %292 {strides = array<i32>} : memref<4x8x16xf32, #tpu.memory_space<vmem>>, vector<1x8x16xf32>,
    return
  }
  func.func @transform_0(%arg0: i32, %arg1: memref<8xf32, #tpu.memory_space<smem>>) -> (i32, i32, i32) {
    %c0_i32 = arith.constant 0 : i32
    %c0_i32_0 = arith.constant 0 : i32
    %c0_i32_1 = arith.constant 0 : i32
    return %arg0, %c0_i32, %c0_i32_0 : i32, i32, i32
  }
  func.func @transform_1(%arg0: i32, %arg1: memref<8xf32, #tpu.memory_space<smem>>) -> (i32, i32) {
    %c0_i32 = arith.constant 0 : i32
    %c0_i32_0 = arith.constant 0 : i32
    %c0_i32_1 = arith.constant 0 : i32
    return %c0_i32, %c0_i32_0 : i32, i32
  }
  func.func @transform_2(%arg0: i32, %arg1: memref<8xf32, #tpu.memory_space<smem>>) -> (i32, i32) {
    %c0_i32 = arith.constant 0 : i32
    %c0_i32_0 = arith.constant 0 : i32
    %c0_i32_1 = arith.constant 0 : i32
    return %c0_i32, %c0_i32_0 : i32, i32
  }
  func.func @transform_3(%arg0: i32, %arg1: memref<8xf32, #tpu.memory_space<smem>>) -> (i32, i32) {
    %c0_i32 = arith.constant 0 : i32
    %c0_i32_0 = arith.constant 0 : i32
    %c0_i32_1 = arith.constant 0 : i32
    return %c0_i32, %c0_i32_0 : i32, i32
  }
  func.func @transform_4(%arg0: i32, %arg1: memref<8xf32, #tpu.memory_space<smem>>) -> (i32, i32, i32) {
    %c0_i32 = arith.constant 0 : i32
    %c0_i32_0 = arith.constant 0 : i32
    %c0_i32_1 = arith.constant 0 : i32
    return %arg0, %c0_i32, %c0_i32_0 : i32, i32, i32
  }
}

</mosaic_0001>

<llo_original>
// kernel: tpu_custom_call.1
$region0: #{tpu_custom_call.1}
  #allocation0 [shape = 'u32[]', space=smem, size = 0x4, offset = 0x4, fixed_abs, tag = 'smem constant byte address 0x4 - core index']
  #allocation1 [shape = 'u32[144,128]{1,0:T(1,128)}', space=vmem, size = 0x12000, scoped, tag = 'internal scratch']
  #allocation2 [shape = 'f32[4,8,20]{2,1,0:T(8,128)}', space=vmem, size = 0x4000, scoped, tag = 'scratch operand']
  #allocation3 [shape = 'f32[8,12]{1,0:T(8,128)}', space=vmem, size = 0x1000, scoped, tag = 'scratch operand']
  #allocation4 [shape = 's32[1]{0}', space=sflag, size = 0x4, scoped, tag = 'scoped memory for tpu_custom_call.1']
  #allocation5 [shape = 'u8[512]{0}', space=smem, size = 0x200, scoped, tag = 'prefetched SMEM operand 0']
  %s0 = inlined_call_operand.vmem [shape: f32[8], index: 0, kind: input, shape index: {}]
  %s1 = inlined_call_operand.hbm [shape: f32[8,8,16], index: 1, kind: input, shape index: {}]
  %s2 = inlined_call_operand.vmem [shape: bf16[4,8], index: 2, kind: input, shape index: {}]
  %s3 = inlined_call_operand.vmem [shape: bf16[8,4], index: 3, kind: input, shape index: {}]
  %s4 = inlined_call_operand.vmem [shape: bf16[8,40], index: 4, kind: input, shape index: {}]
  %s5 = inlined_call_operand.hbm [shape: f32[8,8,16], index: 5, kind: output, shape index: {}]
  %s6 = sld [smem:[#allocation0]]
  $region53: #{tpu_custom_call.1} parent=0
    _
  %s8 = ssub.s32 1, %s6
  %s9 = scalar_select 0, %s8, %s6
  %s10 = sshll.u32 %s0, 4
  %s11 = int_to_ptr.vmem [resolvable:$true] %s10
  %13 = dma.vmem_to_smem %s11, 16, [#allocation5], [#allocation4]
  %14 = dma.done [#allocation4], 16
  %15 = sfence
  $region1: #{tpu_custom_call.1} parent=0
    #allocation6 [shape = 'u8[32768]{0}', space=vmem, size = 0x8000, scoped, tag = 'input window, operand 1']
    #allocation7 [shape = 's32[2]{0}', space=sflag, size = 0x8, scoped, tag = 'scoped memory for tpu_custom_call.1']
    #allocation8 [shape = 's32[2]{0}', space=sflag, size = 0x8, scoped, tag = 'scoped memory for tpu_custom_call.1']
    #allocation9 [shape = 'u8[32768]{0}', space=vmem, size = 0x8000, scoped, tag = 'output window, operand 0']
    %16 = vsyncpa [#allocation7], 0
    %s17 = scalar_lea.sflag [#allocation7], 1
    %18 = vsyncpa %s17, 0
    %19 = vsyncpa [#allocation8], 0
    %s20 = scalar_lea.sflag [#allocation8], 1
    %21 = vsyncpa %s20, 0
    loop: start=0, step=1, limit=4
    $region2: #{tpu_custom_call.1} parent=1 // loop_pre_header
      _
    $region3: #{tpu_custom_call.1} parent=1 // loop_header
      %s23 = sphi 0, %s27
      %p24 = scmp.ge.s32.totalorder %s23, 4
      %s33 = sphi 0, %s35
      %s36 = sphi 0, %s33
      %s37 = sphi 0, %s36
      %s53 = sphi 0, %s37
      %s57 = sphi 0, %s57
      %s59 = sphi 0, %s57
      %s60 = sphi 0, %s59
      %s74 = sphi 0, %s60
      %s78 = sphi 0, %s78
      %s80 = sphi 0, %s78
      %s81 = sphi 0, %s80
      %s95 = sphi 0, %s81
      %s99 = sphi 0, %s99
      %s101 = sphi 0, %s99
      %s102 = sphi 0, %s101
      %s116 = sphi 0, %s102
      %s122 = sphi 0, %s124
      %s125 = sphi 0, %s122
      %s126 = sphi 0, %s125
      %s142 = sphi 0, %s126
    $region4: #{tpu_custom_call.1} parent=1 // loop_header_branch
      %26 = sbr.rel (%p24) target = $region8
    $region5: #{tpu_custom_call.1} parent=1 // loop_body
      %s28 = ssub.s32 %s23, 1
      %s29 = ssub.s32 %s23, 2
      %s30 = sadd.s32 %s23, 1
      %s31 = ssub.s32 %s23, %s30
      %p32 = scmp.eq.s32.totalorder %s31, 0
      %s34 = sadd.s32 %s33, 1
      %s35 = scalar_select %p32, %s33, %s34
      %p38 = pneg %p32
      %p39 = scmp.eq.s32.totalorder %s23, 1
      %p40 = por %p38, %p39
      %p41 = scmp.ne.s32.totalorder %s33, %s36
      %p42 = scmp.eq.s32.totalorder %s23, 0
      %p43 = por %p41, %p42
      %p44 = scmp.ne.s32.totalorder %s33, %s36
      %p45 = scmp.eq.s32.totalorder %s28, 1
      %p46 = por %p44, %p45
      %p47 = scmp.ne.s32.totalorder %s36, %s37
      %p48 = scmp.eq.s32.totalorder %s28, 0
      %p49 = por %p47, %p48
      %p50 = scmp.ne.s32.totalorder %s36, %s37
      %p51 = scmp.eq.s32.totalorder %s29, 1
      %p52 = por %p50, %p51
      %p54 = scmp.ne.s32.totalorder %s37, %s53
      %p55 = scmp.eq.s32.totalorder %s29, 0
      %p56 = por %p54, %p55
      %s58 = sadd.s32 %s57, 1
      %p61 = scmp.eq.s32.totalorder %s23, 1
      %p62 = scmp.ne.s32.totalorder %s57, %s59
      %p63 = scmp.eq.s32.totalorder %s23, 0
      %p64 = por %p62, %p63
      %p65 = scmp.ne.s32.totalorder %s57, %s59
      %p66 = scmp.eq.s32.totalorder %s28, 1
      %p67 = por %p65, %p66
      %p68 = scmp.ne.s32.totalorder %s59, %s60
      %p69 = scmp.eq.s32.totalorder %s28, 0
      %p70 = por %p68, %p69
      %p71 = scmp.ne.s32.totalorder %s59, %s60
      %p72 = scmp.eq.s32.totalorder %s29, 1
      %p73 = por %p71, %p72
      %p75 = scmp.ne.s32.totalorder %s60, %s74
      %p76 = scmp.eq.s32.totalorder %s29, 0
      %p77 = por %p75, %p76
      %s79 = sadd.s32 %s78, 1
      %p82 = scmp.eq.s32.totalorder %s23, 1
      %p83 = scmp.ne.s32.totalorder %s78, %s80
      %p84 = scmp.eq.s32.totalorder %s23, 0
      %p85 = por %p83, %p84
      %p86 = scmp.ne.s32.totalorder %s78, %s80
      %p87 = scmp.eq.s32.totalorder %s28, 1
      %p88 = por %p86, %p87
      %p89 = scmp.ne.s32.totalorder %s80, %s81
      %p90 = scmp.eq.s32.totalorder %s28, 0
      %p91 = por %p89, %p90
      %p92 = scmp.ne.s32.totalorder %s80, %s81
      %p93 = scmp.eq.s32.totalorder %s29, 1
      %p94 = por %p92, %p93
      %p96 = scmp.ne.s32.totalorder %s81, %s95
      %p97 = scmp.eq.s32.totalorder %s29, 0
      %p98 = por %p96, %p97
      %s100 = sadd.s32 %s99, 1
      %p103 = scmp.eq.s32.totalorder %s23, 1
      %p104 = scmp.ne.s32.totalorder %s99, %s101
      %p105 = scmp.eq.s32.totalorder %s23, 0
      %p106 = por %p104, %p105
      %p107 = scmp.ne.s32.totalorder %s99, %s101
      %p108 = scmp.eq.s32.totalorder %s28, 1
      %p109 = por %p107, %p108
      %p110 = scmp.ne.s32.totalorder %s101, %s102
      %p111 = scmp.eq.s32.totalorder %s28, 0
      %p112 = por %p110, %p111
      %p113 = scmp.ne.s32.totalorder %s101, %s102
      %p114 = scmp.eq.s32.totalorder %s29, 1
      %p115 = por %p113, %p114
      %p117 = scmp.ne.s32.totalorder %s102, %s116
      %p118 = scmp.eq.s32.totalorder %s29, 0
      %p119 = por %p117, %p118
      %s120 = ssub.s32 %s23, %s30
      %p121 = scmp.eq.s32.totalorder %s120, 0
      %s123 = sadd.s32 %s122, 1
      %s124 = scalar_select %p121, %s122, %s123
      %p127 = pneg %p121
      %p128 = scmp.eq.s32.totalorder %s23, 1
      %p129 = por %p127, %p128
      %p130 = scmp.ne.s32.totalorder %s122, %s125
      %p131 = scmp.eq.s32.totalorder %s23, 0
      %p132 = por %p130, %p131
      %p133 = scmp.ne.s32.totalorder %s122, %s125
      %p134 = scmp.eq.s32.totalorder %s28, 1
      %p135 = por %p133, %p134
      %p136 = scmp.ne.s32.totalorder %s125, %s126
      %p137 = scmp.eq.s32.totalorder %s28, 0
      %p138 = por %p136, %p137
      %p139 = scmp.ne.s32.totalorder %s125, %s126
      %p140 = scmp.eq.s32.totalorder %s29, 1
      %p141 = por %p139, %p140
      %p143 = scmp.ne.s32.totalorder %s126, %s142
      %p144 = scmp.eq.s32.totalorder %s29, 0
      %p145 = por %p143, %p144
      %p146 = scmp.le.s32.totalorder 1, %s23
      %p147 = scmp.lt.s32.totalorder %s23, 3
      %p148 = pnand %p146, %p147
      %p149 = pneg %p148
      // Predicated region
      $region9: #{tpu_custom_call.1} parent=5 // pred_check
        _
      $region10: #{tpu_custom_call.1} parent=5 // pred_check_branch
        %151 = sbr.rel (%p148) target = $region12
      $region11: #{tpu_custom_call.1} parent=5 // pred_region
        %s152 = ssub.s32 %s23, 1
        // Predicated region
        $region13: #{tpu_custom_call.1} parent=11 // pred_check
          %p153 = pneg %p70
        $region14: #{tpu_custom_call.1} parent=11 // pred_check_branch
          %155 = sbr.rel (%p153) target = $region16
        $region15: #{tpu_custom_call.1} parent=11 // pred_region
          _
        $region16: #{tpu_custom_call.1} parent=11 // pred_fallthru
          _
        // Predicated region
        $region17: #{tpu_custom_call.1} parent=11 // pred_check
          %p156 = pneg %p91
        $region18: #{tpu_custom_call.1} parent=11 // pred_check_branch
          %158 = sbr.rel (%p156) target = $region20
        $region19: #{tpu_custom_call.1} parent=11 // pred_region
          _
        $region20: #{tpu_custom_call.1} parent=11 // pred_fallthru
          _
        // Predicated region
        $region21: #{tpu_custom_call.1} parent=11 // pred_check
          %p159 = pneg %p112
        $region22: #{tpu_custom_call.1} parent=11 // pred_check_branch
          %161 = sbr.rel (%p159) target = $region24
        $region23: #{tpu_custom_call.1} parent=11 // pred_region
          _
        $region24: #{tpu_custom_call.1} parent=11 // pred_fallthru
          _
      $region12: #{tpu_custom_call.1} parent=5 // pred_fallthru
        _
      %p162 = scmp.lt.s32.totalorder %s23, 2
      // Predicated region
      $region25: #{tpu_custom_call.1} parent=5 // pred_check
        %p163 = pneg %p162
      $region26: #{tpu_custom_call.1} parent=5 // pred_check_branch
        %165 = sbr.rel (%p163) target = $region28
      $region27: #{tpu_custom_call.1} parent=5 // pred_region
        // Predicated region
        $region29: #{tpu_custom_call.1} parent=27 // pred_check
          %p166 = pneg %p43
        $region30: #{tpu_custom_call.1} parent=27 // pred_check_branch
          %168 = sbr.rel (%p166) target = $region32
        $region31: #{tpu_custom_call.1} parent=27 // pred_region
          %s169 = sand.u32 %s33, 1
          %s170 = scalar_lea.sflag [#allocation7], %s169
          %s171 = sand.u32 %s33, 1
          %s172 = smul.addr %s171, 32
          %s173 = scalar_lea.vmem [#allocation6], %s172
          %s174 = smul.u32 4, %s23
          %s176 = ssub.s32 512, 512
          %177 = vsyncadd %s170, %s176
          %s178 = smul.addr %s174, 128
          %s179 = scalar_lea.hbm %s1, %s178
          %s180 = sshll.u32 %s173, 4
          %s181 = int_to_ptr.vmem [resolvable:$true] %s180
          %186 = dma.hbm_to_vmem [thread:$0]  %s179, 512, %s181, %s170, 128, 128, 8
        $region32: #{tpu_custom_call.1} parent=27 // pred_fallthru
          _
      $region28: #{tpu_custom_call.1} parent=5 // pred_fallthru
        _
      %p187 = scmp.le.s32.totalorder 1, %s23
      %p188 = scmp.lt.s32.totalorder %s23, 3
      %p189 = pnand %p187, %p188
      %p190 = pneg %p189
      // Predicated region
      $region33: #{tpu_custom_call.1} parent=5 // pred_check
        _
      $region34: #{tpu_custom_call.1} parent=5 // pred_check_branch
        %192 = sbr.rel (%p189) target = $region36
      $region35: #{tpu_custom_call.1} parent=5 // pred_region
        %s193 = ssub.s32 %s23, 1
        %s194 = sand.u32 %s36, 1
        %s195 = scalar_lea.sflag [#allocation7], %s194
        %s196 = sand.u32 %s36, 1
        %s197 = smul.addr %s196, 32
        %s198 = scalar_lea.vmem [#allocation6], %s197
        // Predicated region
        $region37: #{tpu_custom_call.1} parent=35 // pred_check
          %p199 = pneg %p49
        $region38: #{tpu_custom_call.1} parent=35 // pred_check_branch
          %201 = sbr.rel (%p199) target = $region40
        $region39: #{tpu_custom_call.1} parent=35 // pred_region
          %202 = dma.done %s195, 512
        $region40: #{tpu_custom_call.1} parent=35 // pred_fallthru
          _
        %s203 = sand.u32 %s36, 1
        %s204 = scalar_lea.sflag [#allocation7], %s203
        %s205 = sand.u32 %s36, 1
        %s206 = smul.addr %s205, 32
        %s207 = scalar_lea.vmem [#allocation6], %s206
        %p208 = pneg %p49
        %p209 = pneg %p46
        %p210 = pneg %p70
        %p211 = pneg %p67
        %p212 = pneg %p91
        %p213 = pneg %p88
        %p214 = pneg %p112
        %p215 = pneg %p109
        %p216 = pneg %p138
        %p217 = pneg %p135
        %s218 = sand.u32 %s125, 1
        %s219 = scalar_lea.sflag [#allocation8], %s218
        %s220 = sand.u32 %s125, 1
        %s221 = smul.addr %s220, 32
        %s222 = scalar_lea.vmem [#allocation9], %s221
        %s223 = smul.u32 4, %s28
        %s224 = smul.u32 4, %s28
        %v226 = vld [vmem:[%s198] sm:$0xff]
        %v227 = vld [vmem:[%s198 + $0x8] sm:$0xff]
        %v228 = vld [vmem:[%s198 + $0x10] sm:$0xff]
        %v229 = vld [vmem:[%s198 + $0x18] sm:$0xff]
        %vm230 = vcmask 15360
        %231 = vst.msk [vmem:[#allocation2] sm:$0xff] %vm230, 0.0
        %232 = vst.msk [vmem:[#allocation2 + $0x8] sm:$0xff] %vm230, 0.0
        %233 = vst.msk [vmem:[#allocation2 + $0x10] sm:$0xff] %vm230, 0.0
        %234 = vst.msk [vmem:[#allocation2 + $0x18] sm:$0xff] %vm230, 0.0
        %vm235 = vcmask 162960
        %236 = vst.msk [vmem:[#allocation2] sm:$0xff] %vm235, 0.0
        %237 = vst.msk [vmem:[#allocation2 + $0x8] sm:$0xff] %vm235, 0.0
        %238 = vst.msk [vmem:[#allocation2 + $0x10] sm:$0xff] %vm235, 0.0
        %239 = vst.msk [vmem:[#allocation2 + $0x18] sm:$0xff] %vm235, 0.0
        %244 = vrot.lane.b32.xlu0 %v226, 2
        %v245 = vpop.permute.xlu0 %244
        %246 = vrot.lane.b32.xlu0 %v227, 2
        %v247 = vpop.permute.xlu0 %246
        %248 = vrot.lane.b32.xlu0 %v228, 2
        %v249 = vpop.permute.xlu0 %248
        %250 = vrot.lane.b32.xlu0 %v229, 2
        %v251 = vpop.permute.xlu0 %250
        %vm256 = vcmask 146448
        %257 = vst.msk [vmem:[#allocation2] sm:$0xff] %vm256, %v245
        %258 = vst.msk [vmem:[#allocation2 + $0x8] sm:$0xff] %vm256, %v247
        %259 = vst.msk [vmem:[#allocation2 + $0x10] sm:$0xff] %vm256, %v249
        %260 = vst.msk [vmem:[#allocation2 + $0x18] sm:$0xff] %vm256, %v251
        %v261 = vld [vmem:[#allocation2] sm:$0xff]
        %v262 = vld [vmem:[#allocation2 + $0x8] sm:$0xff]
        %v263 = vld [vmem:[#allocation2 + $0x10] sm:$0xff]
        %v264 = vld [vmem:[#allocation2 + $0x18] sm:$0xff]
        %v265 = vmul.f32 %v261, 0.054488685
        %v266 = vmul.f32 %v262, 0.054488685
        %v267 = vmul.f32 %v263, 0.054488685
        %v268 = vmul.f32 %v264, 0.054488685
        %v269 = vmul.f32 %v261, 0.24420135
        %v270 = vmul.f32 %v262, 0.24420135
        %v271 = vmul.f32 %v263, 0.24420135
        %v272 = vmul.f32 %v264, 0.24420135
        %277 = vrot.lane.b32.xlu0 %v269, 127
        %v278 = vpop.permute.xlu0 %277
        %279 = vrot.lane.b32.xlu0 %v270, 127
        %v280 = vpop.permute.xlu0 %279
        %281 = vrot.lane.b32.xlu0 %v271, 127
        %v282 = vpop.permute.xlu0 %281
        %283 = vrot.lane.b32.xlu0 %v272, 127
        %v284 = vpop.permute.xlu0 %283
        %v289 = vadd.f32 %v265, %v278
        %v290 = vadd.f32 %v266, %v280
        %v291 = vadd.f32 %v267, %v282
        %v292 = vadd.f32 %v268, %v284
        %v293 = vmul.f32 %v261, 0.40261996
        %v294 = vmul.f32 %v262, 0.40261996
        %v295 = vmul.f32 %v263, 0.40261996
        %v296 = vmul.f32 %v264, 0.40261996
        %301 = vrot.lane.b32.xlu0 %v293, 126
        %v302 = vpop.permute.xlu0 %301
        %303 = vrot.lane.b32.xlu0 %v294, 126
        %v304 = vpop.permute.xlu0 %303
        %305 = vrot.lane.b32.xlu0 %v295, 126
        %v306 = vpop.permute.xlu0 %305
        %307 = vrot.lane.b32.xlu0 %v296, 126
        %v308 = vpop.permute.xlu0 %307
        %v313 = vadd.f32 %v289, %v302
        %v314 = vadd.f32 %v290, %v304
        %v315 = vadd.f32 %v291, %v306
        %v316 = vadd.f32 %v292, %v308
        %317 = vrot.lane.b32.xlu0 %v269, 125
        %v318 = vpop.permute.xlu0 %317
        %319 = vrot.lane.b32.xlu0 %v270, 125
        %v320 = vpop.permute.xlu0 %319
        %321 = vrot.lane.b32.xlu0 %v271, 125
        %v322 = vpop.permute.xlu0 %321
        %323 = vrot.lane.b32.xlu0 %v272, 125
        %v324 = vpop.permute.xlu0 %323
        %v329 = vadd.f32 %v313, %v318
        %v330 = vadd.f32 %v314, %v320
        %v331 = vadd.f32 %v315, %v322
        %v332 = vadd.f32 %v316, %v324
        %337 = vrot.lane.b32.xlu0 %v265, 124
        %v338 = vpop.permute.xlu0 %337
        %339 = vrot.lane.b32.xlu0 %v266, 124
        %v340 = vpop.permute.xlu0 %339
        %341 = vrot.lane.b32.xlu0 %v267, 124
        %v342 = vpop.permute.xlu0 %341
        %343 = vrot.lane.b32.xlu0 %v268, 124
        %v344 = vpop.permute.xlu0 %343
        %v349 = vadd.f32 %v329, %v338
        %v350 = vadd.f32 %v330, %v340
        %v351 = vadd.f32 %v331, %v342
        %v352 = vadd.f32 %v332, %v344
        %vm353 = vcmask 130048
        %v354 = vsel %vm353, %v349, -inf
        %355 = vmax.xlane.f32.xlu0 %v354
        %v356 = vpop.xlane.xlu0 %355
        %v357 = vsel %vm353, %v350, -inf
        %358 = vmax.xlane.f32.xlu0 %v357
        %v359 = vpop.xlane.xlu0 %358
        %v360 = vsel %vm353, %v351, -inf
        %361 = vmax.xlane.f32.xlu0 %v360
        %v362 = vpop.xlane.xlu0 %361
        %v363 = vsel %vm353, %v352, -inf
        %364 = vmax.xlane.f32.xlu0 %v363
        %v365 = vpop.xlane.xlu0 %364
        %v366 = vsel %vm353, %v226, 0.0
        %367 = vadd.xlane.f32.xlu0 %v366
        %v368 = vpop.xlane.xlu0 %367
        %v369 = vsel %vm353, %v227, 0.0
        %370 = vadd.xlane.f32.xlu0 %v369
        %v371 = vpop.xlane.xlu0 %370
        %v372 = vsel %vm353, %v228, 0.0
        %373 = vadd.xlane.f32.xlu0 %v372
        %v374 = vpop.xlane.xlu0 %373
        %v375 = vsel %vm353, %v229, 0.0
        %376 = vadd.xlane.f32.xlu0 %v375
        %v377 = vpop.xlane.xlu0 %376
        %v378 = vrcp.pop 16.0
        %v379 = vmul.f32 %v368, %v378
        %v380 = vmul.f32 %v371, %v378
        %v381 = vmul.f32 %v374, %v378
        %v382 = vmul.f32 %v377, %v378
        %v383 = vsel %vm353, %v226, -inf
        %384 = vmax.xlane.f32.xlu0 %v383
        %v385 = vpop.xlane.xlu0 %384
        %v386 = vsel %vm353, %v227, -inf
        %387 = vmax.xlane.f32.xlu0 %v386
        %v388 = vpop.xlane.xlu0 %387
        %v389 = vsel %vm353, %v228, -inf
        %390 = vmax.xlane.f32.xlu0 %v389
        %v391 = vpop.xlane.xlu0 %390
        %v392 = vsel %vm353, %v229, -inf
        %393 = vmax.xlane.f32.xlu0 %v392
        %v394 = vpop.xlane.xlu0 %393
        %v395 = vsub.f32 %v226, %v385
        %v396 = vsub.f32 %v227, %v388
        %v397 = vsub.f32 %v228, %v391
        %v398 = vsub.f32 %v229, %v394
        %v399 = vmul.f32 %v395, 1.442695
        %v400 = vpow.pop %v399
        %v401 = vmul.f32 %v396, 1.442695
        %v402 = vpow.pop %v401
        %v403 = vmul.f32 %v397, 1.442695
        %v404 = vpow.pop %v403
        %v405 = vmul.f32 %v398, 1.442695
        %v406 = vpow.pop %v405
        %v407 = vsel %vm353, %v400, 0.0
        %408 = vadd.xlane.f32.xlu0 %v407
        %v409 = vpop.xlane.xlu0 %408
        %v410 = vsel %vm353, %v402, 0.0
        %411 = vadd.xlane.f32.xlu0 %v410
        %v412 = vpop.xlane.xlu0 %411
        %v413 = vsel %vm353, %v404, 0.0
        %414 = vadd.xlane.f32.xlu0 %v413
        %v415 = vpop.xlane.xlu0 %414
        %v416 = vsel %vm353, %v406, 0.0
        %417 = vadd.xlane.f32.xlu0 %v416
        %v418 = vpop.xlane.xlu0 %417
        %v419 = vmul.f32 %v400, %v395
        %v420 = vmul.f32 %v402, %v396
        %v421 = vmul.f32 %v404, %v397
        %v422 = vmul.f32 %v406, %v398
        %v423 = vsel %vm353, %v419, 0.0
        %424 = vadd.xlane.f32.xlu0 %v423
        %v425 = vpop.xlane.xlu0 %424
        %v426 = vsel %vm353, %v420, 0.0
        %427 = vadd.xlane.f32.xlu0 %v426
        %v428 = vpop.xlane.xlu0 %427
        %v429 = vsel %vm353, %v421, 0.0
        %430 = vadd.xlane.f32.xlu0 %v429
        %v431 = vpop.xlane.xlu0 %430
        %v432 = vsel %vm353, %v422, 0.0
        %433 = vadd.xlane.f32.xlu0 %v432
        %v434 = vpop.xlane.xlu0 %433
        %v435 = vlog2.pop %v409
        %v436 = vmul.f32 %v435, 0.6931472
        %v437 = vlog2.pop %v412
        %v438 = vmul.f32 %v437, 0.6931472
        %v439 = vlog2.pop %v415
        %v440 = vmul.f32 %v439, 0.6931472
        %v441 = vlog2.pop %v418
        %v442 = vmul.f32 %v441, 0.6931472
        %v443 = vrcp.pop %v409
        %v444 = vrcp.pop %v412
        %v445 = vrcp.pop %v415
        %v446 = vrcp.pop %v418
        %v447 = vmul.f32 %v425, %v443
        %v448 = vmul.f32 %v428, %v444
        %v449 = vmul.f32 %v431, %v445
        %v450 = vmul.f32 %v434, %v446
        %v451 = vsub.f32 %v436, %v447
        %v452 = vsub.f32 %v438, %v448
        %v453 = vsub.f32 %v440, %v449
        %v454 = vsub.f32 %v442, %v450
        %v455 = vrot.slane %v451, 4
        %v456 = vmin.f32 %v451, %v455
        %v457 = vrot.slane %v456, 2
        %v458 = vmin.f32 %v456, %v457
        %v459 = vrot.slane %v458, 1
        %v460 = vmin.f32 %v458, %v459
        %v461 = vrot.slane %v452, 4
        %v462 = vmin.f32 %v452, %v461
        %v463 = vrot.slane %v462, 2
        %v464 = vmin.f32 %v462, %v463
        %v465 = vrot.slane %v464, 1
        %v466 = vmin.f32 %v464, %v465
        %v467 = vrot.slane %v453, 4
        %v468 = vmin.f32 %v453, %v467
        %v469 = vrot.slane %v468, 2
        %v470 = vmin.f32 %v468, %v469
        %v471 = vrot.slane %v470, 1
        %v472 = vmin.f32 %v470, %v471
        %v473 = vrot.slane %v454, 4
        %v474 = vmin.f32 %v454, %v473
        %v475 = vrot.slane %v474, 2
        %v476 = vmin.f32 %v474, %v475
        %v477 = vrot.slane %v476, 1
        %v478 = vmin.f32 %v476, %v477
        %v479 = vrot.slane %v451, 4
        %v480 = vmax.f32 %v451, %v479
        %v481 = vrot.slane %v480, 2
        %v482 = vmax.f32 %v480, %v481
        %v483 = vrot.slane %v482, 1
        %v484 = vmax.f32 %v482, %v483
        %v485 = vrot.slane %v452, 4
        %v486 = vmax.f32 %v452, %v485
        %v487 = vrot.slane %v486, 2
        %v488 = vmax.f32 %v486, %v487
        %v489 = vrot.slane %v488, 1
        %v490 = vmax.f32 %v488, %v489
        %v491 = vrot.slane %v453, 4
        %v492 = vmax.f32 %v453, %v491
        %v493 = vrot.slane %v492, 2
        %v494 = vmax.f32 %v492, %v493
        %v495 = vrot.slane %v494, 1
        %v496 = vmax.f32 %v494, %v495
        %v497 = vrot.slane %v454, 4
        %v498 = vmax.f32 %v454, %v497
        %v499 = vrot.slane %v498, 2
        %v500 = vmax.f32 %v498, %v499
        %v501 = vrot.slane %v500, 1
        %v502 = vmax.f32 %v500, %v501
        %v503 = vsub.f32 %v451, %v460
        %v504 = vsub.f32 %v452, %v466
        %v505 = vsub.f32 %v453, %v472
        %v506 = vsub.f32 %v454, %v478
        %v507 = vsub.f32 %v484, %v460
        %v508 = vsub.f32 %v490, %v466
        %v509 = vsub.f32 %v496, %v472
        %v510 = vsub.f32 %v502, %v478
        %v511 = vrcp.pop %v507
        %v512 = vmul.f32 %v503, %v511
        %v513 = vrcp.pop %v508
        %v514 = vmul.f32 %v504, %v513
        %v515 = vrcp.pop %v509
        %v516 = vmul.f32 %v505, %v515
        %v517 = vrcp.pop %v510
        %v518 = vmul.f32 %v506, %v517
        %vm519 = vcmask 7168
        %520 = vst.msk [vmem:[#allocation3] sm:$0xff] %vm519, %v379
        %vm521 = vcmask 39968
        %522 = vst.msk [vmem:[#allocation3] sm:$0xff] %vm521, %v356
        %vm523 = vcmask 72768
        %524 = vst.msk [vmem:[#allocation3] sm:$0xff] %vm523, %v512
        %vm525 = vcmask 15368
        %526 = vst.msk [vmem:[#allocation3] sm:$0xff] %vm525, %v380
        %vm527 = vcmask 48168
        %528 = vst.msk [vmem:[#allocation3] sm:$0xff] %vm527, %v359
        %vm529 = vcmask 80968
        %530 = vst.msk [vmem:[#allocation3] sm:$0xff] %vm529, %v514
        %vm531 = vcmask 23568
        %532 = vst.msk [vmem:[#allocation3] sm:$0xff] %vm531, %v381
        %vm533 = vcmask 56368
        %534 = vst.msk [vmem:[#allocation3] sm:$0xff] %vm533, %v362
        %vm535 = vcmask 89168
        %536 = vst.msk [vmem:[#allocation3] sm:$0xff] %vm535, %v516
        %vm537 = vcmask 31768
        %538 = vst.msk [vmem:[#allocation3] sm:$0xff] %vm537, %v382
        %vm539 = vcmask 64568
        %540 = vst.msk [vmem:[#allocation3] sm:$0xff] %vm539, %v365
        %vm541 = vcmask 97368
        %542 = vst.msk [vmem:[#allocation3] sm:$0xff] %vm541, %v518
        %v543 = vld [vmem:[#allocation3] sm:$0xff]
        %v544 = vpack.c.bf16 %v543, %v543
        %v545 = vld [vmem:[%s2] sm:$0x3]
        %vm546 = vcmask 64512
        %v548 = vsel %vm546, %v545, 0
        %vm550 = vcmask 1043456
        %v552 = vsel %vm550, %v544, 0
        %554 = vmatprep.subr.bf16.mxu0 0
        %555 = vmatpush1.bf16.msra.mxu0 %v552
        %556 = vmatprep.subr.bf16.mxu0 0
        %557 = vmatpush1.bf16.msra.mxu0 0
        %558 = vmatprep.subr.bf16.mxu0 0
        %559 = vmatpush1.bf16.msra.mxu0 0
        %560 = vmatprep.subr.bf16.mxu0 0
        %561 = vmatpush1.bf16.msra.mxu0 0
        %562 = vmatprep.subr.bf16.mxu0 0
        %563 = vmatpush1.bf16.msra.mxu0 0
        %564 = vmatprep.subr.bf16.mxu0 0
        %565 = vmatpush1.bf16.msra.mxu0 0
        %566 = vmatprep.subr.bf16.mxu0 0
        %567 = vmatpush1.bf16.msra.mxu0 0
        %568 = vmatprep.subr.bf16.mxu0 0
        %569 = vmatpush1.bf16.msra.mxu0 0
        %570 = vmatprep.subr.bf16.mxu0 0
        %571 = vmatpush1.bf16.msra.mxu0 0
        %572 = vmatprep.subr.bf16.mxu0 0
        %573 = vmatpush1.bf16.msra.mxu0 0
        %574 = vmatprep.subr.bf16.mxu0 0
        %575 = vmatpush1.bf16.msra.mxu0 0
        %576 = vmatprep.subr.bf16.mxu0 0
        %577 = vmatpush1.bf16.msra.mxu0 0
        %578 = vmatprep.subr.bf16.mxu0 0
        %579 = vmatpush1.bf16.msra.mxu0 0
        %580 = vmatprep.subr.bf16.mxu0 0
        %581 = vmatpush1.bf16.msra.mxu0 0
        %582 = vmatprep.subr.bf16.mxu0 0
        %583 = vmatpush1.bf16.msra.mxu0 0
        %584 = vmatprep.subr.bf16.mxu0 0
        %585 = vmatpush1.bf16.msra.mxu0 0
        %586 = vmatprep.mubr.bf16.mxu0 0
        %587 = vmatmul.mubr.bf16.gmra.mrb[0].mxu0 %v548
        %v588 = vpop.f32.mrb[0].mxu0
        %v589 = vadd.f32 0.0, %v588
        %v590 = vpop.f32.mrb[0].mxu0
        %v591 = vpop.f32.mrb[0].mxu0
        %v592 = vpop.f32.mrb[0].mxu0
        %593 = vdwg.mxu0
        %v594 = vmax.f32 %v589, 0.0
        %v595 = vld [vmem:[%s3] sm:$0xf]
        %v596 = vpack.c.bf16 %v594, %v594
        %vm597 = vcmask 31744
        %v599 = vsel %vm597, %v595, 0
        %vm601 = vcmask 1041408
        %v603 = vsel %vm601, %v596, 0
        %605 = vmatprep.subr.bf16.mxu0 0
        %606 = vmatpush1.bf16.msra.mxu0 %v603
        %607 = vmatprep.subr.bf16.mxu0 0
        %608 = vmatpush1.bf16.msra.mxu0 0
        %609 = vmatprep.subr.bf16.mxu0 0
        %610 = vmatpush1.bf16.msra.mxu0 0
        %611 = vmatprep.subr.bf16.mxu0 0
        %612 = vmatpush1.bf16.msra.mxu0 0
        %613 = vmatprep.subr.bf16.mxu0 0
        %614 = vmatpush1.bf16.msra.mxu0 0
        %615 = vmatprep.subr.bf16.mxu0 0
        %616 = vmatpush1.bf16.msra.mxu0 0
        %617 = vmatprep.subr.bf16.mxu0 0
        %618 = vmatpush1.bf16.msra.mxu0 0
        %619 = vmatprep.subr.bf16.mxu0 0
        %620 = vmatpush1.bf16.msra.mxu0 0
        %621 = vmatprep.subr.bf16.mxu0 0
        %622 = vmatpush1.bf16.msra.mxu0 0
        %623 = vmatprep.subr.bf16.mxu0 0
        %624 = vmatpush1.bf16.msra.mxu0 0
        %625 = vmatprep.subr.bf16.mxu0 0
        %626 = vmatpush1.bf16.msra.mxu0 0
        %627 = vmatprep.subr.bf16.mxu0 0
        %628 = vmatpush1.bf16.msra.mxu0 0
        %629 = vmatprep.subr.bf16.mxu0 0
        %630 = vmatpush1.bf16.msra.mxu0 0
        %631 = vmatprep.subr.bf16.mxu0 0
        %632 = vmatpush1.bf16.msra.mxu0 0
        %633 = vmatprep.subr.bf16.mxu0 0
        %634 = vmatpush1.bf16.msra.mxu0 0
        %635 = vmatprep.subr.bf16.mxu0 0
        %636 = vmatpush1.bf16.msra.mxu0 0
        %637 = vmatprep.mubr.bf16.mxu0 0
        %638 = vmatmul.mubr.bf16.gmra.mrb[0].mxu0 %v599
        %v639 = vpop.f32.mrb[0].mxu0
        %v640 = vadd.f32 0.0, %v639
        %v641 = vpop.f32.mrb[0].mxu0
        %v642 = vpop.f32.mrb[0].mxu0
        %v643 = vpop.f32.mrb[0].mxu0
        %644 = vdwg.mxu0
        %s645 = sld [smem:[#allocation5]]
        %v646 = vstv %s645
        %v647 = vmul.f32 %v646, %v640
        %s648 = sld [smem:[#allocation5 + $0x1]]
        %v649 = vstv %s648
        %v650 = vmul.f32 %v649, %v640
        %652 = vrot.lane.b32.xlu0 %v650, 124
        %v653 = vpop.permute.xlu0 %652
        %v655 = vadd.f32 %v647, %v653
        %s656 = sld [smem:[#allocation5 + $0x2]]
        %v657 = vstv %s656
        %v658 = vmul.f32 %v657, %v640
        %660 = vrot.lane.b32.xlu0 %v658, 120
        %v661 = vpop.permute.xlu0 %660
        %v663 = vadd.f32 %v655, %v661
        %v664 = vxor.u32 %v663, 2147483648
        %v665 = vmul.f32 %v664, 1.442695
        %v666 = vpow.pop %v665
        %v667 = vadd.f32 %v666, 1.0
        %v668 = vrcp.pop %v667
        %v669 = vmul.f32 1.0, %v668
        %v670 = vrot.slane %v366, 4
        %v671 = vadd.f32 %v366, %v670
        %v672 = vrot.slane %v671, 2
        %v673 = vadd.f32 %v671, %v672
        %v674 = vrot.slane %v673, 1
        %v675 = vadd.f32 %v673, %v674
        %v676 = vrot.slane %v369, 4
        %v677 = vadd.f32 %v369, %v676
        %v678 = vrot.slane %v677, 2
        %v679 = vadd.f32 %v677, %v678
        %v680 = vrot.slane %v679, 1
        %v681 = vadd.f32 %v679, %v680
        %v682 = vrot.slane %v372, 4
        %v683 = vadd.f32 %v372, %v682
        %v684 = vrot.slane %v683, 2
        %v685 = vadd.f32 %v683, %v684
        %v686 = vrot.slane %v685, 1
        %v687 = vadd.f32 %v685, %v686
        %v688 = vrot.slane %v375, 4
        %v689 = vadd.f32 %v375, %v688
        %v690 = vrot.slane %v689, 2
        %v691 = vadd.f32 %v689, %v690
        %v692 = vrot.slane %v691, 1
        %v693 = vadd.f32 %v691, %v692
        %v694 = vrcp.pop 8.0
        %v695 = vmul.f32 %v675, %v694
        %v696 = vmul.f32 %v681, %v694
        %v697 = vmul.f32 %v687, %v694
        %v698 = vmul.f32 %v693, %v694
        %v699 = vrot.slane %v383, 4
        %v700 = vmax.f32 %v383, %v699
        %v701 = vrot.slane %v700, 2
        %v702 = vmax.f32 %v700, %v701
        %v703 = vrot.slane %v702, 1
        %v704 = vmax.f32 %v702, %v703
        %v705 = vrot.slane %v386, 4
        %v706 = vmax.f32 %v386, %v705
        %v707 = vrot.slane %v706, 2
        %v708 = vmax.f32 %v706, %v707
        %v709 = vrot.slane %v708, 1
        %v710 = vmax.f32 %v708, %v709
        %v711 = vrot.slane %v389, 4
        %v712 = vmax.f32 %v389, %v711
        %v713 = vrot.slane %v712, 2
        %v714 = vmax.f32 %v712, %v713
        %v715 = vrot.slane %v714, 1
        %v716 = vmax.f32 %v714, %v715
        %v717 = vrot.slane %v392, 4
        %v718 = vmax.f32 %v392, %v717
        %v719 = vrot.slane %v718, 2
        %v720 = vmax.f32 %v718, %v719
        %v721 = vrot.slane %v720, 1
        %v722 = vmax.f32 %v720, %v721
        %v723 = vsub.f32 %v226, %v704
        %v724 = vsub.f32 %v227, %v710
        %v725 = vsub.f32 %v228, %v716
        %v726 = vsub.f32 %v229, %v722
        %v727 = vmul.f32 %v723, 1.442695
        %v728 = vpow.pop %v727
        %v729 = vmul.f32 %v724, 1.442695
        %v730 = vpow.pop %v729
        %v731 = vmul.f32 %v725, 1.442695
        %v732 = vpow.pop %v731
        %v733 = vmul.f32 %v726, 1.442695
        %v734 = vpow.pop %v733
        %v735 = vsel %vm353, %v728, 0.0
        %v736 = vrot.slane %v735, 4
        %v737 = vadd.f32 %v735, %v736
        %v738 = vrot.slane %v737, 2
        %v739 = vadd.f32 %v737, %v738
        %v740 = vrot.slane %v739, 1
        %v741 = vadd.f32 %v739, %v740
        %v742 = vsel %vm353, %v730, 0.0
        %v743 = vrot.slane %v742, 4
        %v744 = vadd.f32 %v742, %v743
        %v745 = vrot.slane %v744, 2
        %v746 = vadd.f32 %v744, %v745
        %v747 = vrot.slane %v746, 1
        %v748 = vadd.f32 %v746, %v747
        %v749 = vsel %vm353, %v732, 0.0
        %v750 = vrot.slane %v749, 4
        %v751 = vadd.f32 %v749, %v750
        %v752 = vrot.slane %v751, 2
        %v753 = vadd.f32 %v751, %v752
        %v754 = vrot.slane %v753, 1
        %v755 = vadd.f32 %v753, %v754
        %v756 = vsel %vm353, %v734, 0.0
        %v757 = vrot.slane %v756, 4
        %v758 = vadd.f32 %v756, %v757
        %v759 = vrot.slane %v758, 2
        %v760 = vadd.f32 %v758, %v759
        %v761 = vrot.slane %v760, 1
        %v762 = vadd.f32 %v760, %v761
        %v763 = vmul.f32 %v728, %v723
        %v764 = vmul.f32 %v730, %v724
        %v765 = vmul.f32 %v732, %v725
        %v766 = vmul.f32 %v734, %v726
        %v767 = vsel %vm353, %v763, 0.0
        %v768 = vrot.slane %v767, 4
        %v769 = vadd.f32 %v767, %v768
        %v770 = vrot.slane %v769, 2
        %v771 = vadd.f32 %v769, %v770
        %v772 = vrot.slane %v771, 1
        %v773 = vadd.f32 %v771, %v772
        %v774 = vsel %vm353, %v764, 0.0
        %v775 = vrot.slane %v774, 4
        %v776 = vadd.f32 %v774, %v775
        %v777 = vrot.slane %v776, 2
        %v778 = vadd.f32 %v776, %v777
        %v779 = vrot.slane %v778, 1
        %v780 = vadd.f32 %v778, %v779
        %v781 = vsel %vm353, %v765, 0.0
        %v782 = vrot.slane %v781, 4
        %v783 = vadd.f32 %v781, %v782
        %v784 = vrot.slane %v783, 2
        %v785 = vadd.f32 %v783, %v784
        %v786 = vrot.slane %v785, 1
        %v787 = vadd.f32 %v785, %v786
        %v788 = vsel %vm353, %v766, 0.0
        %v789 = vrot.slane %v788, 4
        %v790 = vadd.f32 %v788, %v789
        %v791 = vrot.slane %v790, 2
        %v792 = vadd.f32 %v790, %v791
        %v793 = vrot.slane %v792, 1
        %v794 = vadd.f32 %v792, %v793
        %v795 = vlog2.pop %v741
        %v796 = vmul.f32 %v795, 0.6931472
        %v797 = vlog2.pop %v748
        %v798 = vmul.f32 %v797, 0.6931472
        %v799 = vlog2.pop %v755
        %v800 = vmul.f32 %v799, 0.6931472
        %v801 = vlog2.pop %v762
        %v802 = vmul.f32 %v801, 0.6931472
        %v803 = vrcp.pop %v741
        %v804 = vrcp.pop %v748
        %v805 = vrcp.pop %v755
        %v806 = vrcp.pop %v762
        %v807 = vmul.f32 %v773, %v803
        %v808 = vmul.f32 %v780, %v804
        %v809 = vmul.f32 %v787, %v805
        %v810 = vmul.f32 %v794, %v806
        %v811 = vsub.f32 %v796, %v807
        %v812 = vsub.f32 %v798, %v808
        %v813 = vsub.f32 %v800, %v809
        %v814 = vsub.f32 %v802, %v810
        %v815 = vsel %vm353, %v811, inf
        %816 = vmin.xlane.f32.xlu0 %v815
        %v817 = vpop.xlane.xlu0 %816
        %v818 = vsel %vm353, %v812, inf
        %819 = vmin.xlane.f32.xlu0 %v818
        %v820 = vpop.xlane.xlu0 %819
        %v821 = vsel %vm353, %v813, inf
        %822 = vmin.xlane.f32.xlu0 %v821
        %v823 = vpop.xlane.xlu0 %822
        %v824 = vsel %vm353, %v814, inf
        %825 = vmin.xlane.f32.xlu0 %v824
        %v826 = vpop.xlane.xlu0 %825
        %v827 = vsel %vm353, %v811, -inf
        %828 = vmax.xlane.f32.xlu0 %v827
        %v829 = vpop.xlane.xlu0 %828
        %v830 = vsel %vm353, %v812, -inf
        %831 = vmax.xlane.f32.xlu0 %v830
        %v832 = vpop.xlane.xlu0 %831
        %v833 = vsel %vm353, %v813, -inf
        %834 = vmax.xlane.f32.xlu0 %v833
        %v835 = vpop.xlane.xlu0 %834
        %v836 = vsel %vm353, %v814, -inf
        %837 = vmax.xlane.f32.xlu0 %v836
        %v838 = vpop.xlane.xlu0 %837
        %v839 = vsub.f32 %v811, %v817
        %v840 = vsub.f32 %v812, %v820
        %v841 = vsub.f32 %v813, %v823
        %v842 = vsub.f32 %v814, %v826
        %v843 = vsub.f32 %v829, %v817
        %v844 = vsub.f32 %v832, %v820
        %v845 = vsub.f32 %v835, %v823
        %v846 = vsub.f32 %v838, %v826
        %v847 = vrcp.pop %v843
        %v848 = vmul.f32 %v839, %v847
        %v849 = vrcp.pop %v844
        %v850 = vmul.f32 %v840, %v849
        %v851 = vrcp.pop %v845
        %v852 = vmul.f32 %v841, %v851
        %v853 = vrcp.pop %v846
        %v854 = vmul.f32 %v842, %v853
        %v855 = vsub.f32 0.0, %v695
        %v856 = vsub.f32 0.0, %v696
        %v857 = vsub.f32 0.0, %v697
        %v858 = vsub.f32 0.0, %v698
        %s859 = sld [smem:[#allocation5 + $0x3]]
        %v860 = vstv %s859
        %v861 = vmul.f32 %v855, %v860
        %v862 = vmul.f32 %v856, %v860
        %v863 = vmul.f32 %v857, %v860
        %v864 = vmul.f32 %v858, %v860
        %s865 = sld [smem:[#allocation5 + $0x4]]
        %v866 = vstv %s865
        %v867 = vmul.f32 %v356, %v866
        %v868 = vmul.f32 %v359, %v866
        %v869 = vmul.f32 %v362, %v866
        %v870 = vmul.f32 %v365, %v866
        %v871 = vadd.f32 %v861, %v867
        %v872 = vadd.f32 %v862, %v868
        %v873 = vadd.f32 %v863, %v869
        %v874 = vadd.f32 %v864, %v870
        %s875 = sld [smem:[#allocation5 + $0x5]]
        %v876 = vstv %s875
        %v877 = vmul.f32 %v848, %v876
        %v878 = vmul.f32 %v850, %v876
        %v879 = vmul.f32 %v852, %v876
        %v880 = vmul.f32 %v854, %v876
        %v881 = vadd.f32 %v871, %v877
        %v882 = vadd.f32 %v872, %v878
        %v883 = vadd.f32 %v873, %v879
        %v884 = vadd.f32 %v874, %v880
        %885 = vst.msk [vmem:[#allocation2] sm:$0xff] %vm230, 0.0
        %886 = vst.msk [vmem:[#allocation2 + $0x8] sm:$0xff] %vm230, 0.0
        %887 = vst.msk [vmem:[#allocation2 + $0x10] sm:$0xff] %vm230, 0.0
        %888 = vst.msk [vmem:[#allocation2 + $0x18] sm:$0xff] %vm230, 0.0
        %889 = vst.msk [vmem:[#allocation2] sm:$0xff] %vm235, 0.0
        %890 = vst.msk [vmem:[#allocation2 + $0x8] sm:$0xff] %vm235, 0.0
        %891 = vst.msk [vmem:[#allocation2 + $0x10] sm:$0xff] %vm235, 0.0
        %892 = vst.msk [vmem:[#allocation2 + $0x18] sm:$0xff] %vm235, 0.0
        %897 = vrot.lane.b32.xlu0 %v881, 2
        %v898 = vpop.permute.xlu0 %897
        %899 = vrot.lane.b32.xlu0 %v882, 2
        %v900 = vpop.permute.xlu0 %899
        %901 = vrot.lane.b32.xlu0 %v883, 2
        %v902 = vpop.permute.xlu0 %901
        %903 = vrot.lane.b32.xlu0 %v884, 2
        %v904 = vpop.permute.xlu0 %903
        %909 = vst.msk [vmem:[#allocation2] sm:$0xff] %vm256, %v898
        %910 = vst.msk [vmem:[#allocation2 + $0x8] sm:$0xff] %vm256, %v900
        %911 = vst.msk [vmem:[#allocation2 + $0x10] sm:$0xff] %vm256, %v902
        %912 = vst.msk [vmem:[#allocation2 + $0x18] sm:$0xff] %vm256, %v904
        %v913 = vld [vmem:[%s4] sm:$0xf]
        %s914 = sld [smem:[#allocation5 + $0x6]]
        %s915 = sld [smem:[#allocation5 + $0x7]]
        %v916 = vld [vmem:[#allocation2] sm:$0xff]
        %918 = vrot.lane.b32.xlu0 %v916, 127
        %v919 = vpop.permute.xlu0 %918
        %921 = vrot.lane.b32.xlu0 %v916, 126
        %v922 = vpop.permute.xlu0 %921
        %924 = vrot.lane.b32.xlu0 %v916, 125
        %v925 = vpop.permute.xlu0 %924
        %927 = vrot.lane.b32.xlu0 %v916, 124
        %v928 = vpop.permute.xlu0 %927
        %v930 = vpack.c.bf16 %v919, %v916
        %v931 = vpack.c.bf16 %v925, %v922
        %v932 = vpack.c.bf16 %v928, %v928
        %vm933 = vcmask 326656
        %v935 = vsel %vm933, %v913, 0
        %v938 = vsel %vm550, %v932, 0
        %940 = vmatprep.subr.bf16.mxu0 0
        %941 = vmatpush1.bf16.msra.mxu0 %v930
        %942 = vmatprep.subr.bf16.mxu0 0
        %943 = vmatpush1.bf16.msra.mxu0 %v931
        %944 = vmatprep.subr.bf16.mxu0 0
        %945 = vmatpush1.bf16.msra.mxu0 %v938
        %946 = vmatprep.subr.bf16.mxu0 0
        %947 = vmatpush1.bf16.msra.mxu0 0
        %948 = vmatprep.subr.bf16.mxu0 0
        %949 = vmatpush1.bf16.msra.mxu0 0
        %950 = vmatprep.subr.bf16.mxu0 0
        %951 = vmatpush1.bf16.msra.mxu0 0
        %952 = vmatprep.subr.bf16.mxu0 0
        %953 = vmatpush1.bf16.msra.mxu0 0
        %954 = vmatprep.subr.bf16.mxu0 0
        %955 = vmatpush1.bf16.msra.mxu0 0
        %956 = vmatprep.subr.bf16.mxu0 0
        %957 = vmatpush1.bf16.msra.mxu0 0
        %958 = vmatprep.subr.bf16.mxu0 0
        %959 = vmatpush1.bf16.msra.mxu0 0
        %960 = vmatprep.subr.bf16.mxu0 0
        %961 = vmatpush1.bf16.msra.mxu0 0
        %962 = vmatprep.subr.bf16.mxu0 0
        %963 = vmatpush1.bf16.msra.mxu0 0
        %964 = vmatprep.subr.bf16.mxu0 0
        %965 = vmatpush1.bf16.msra.mxu0 0
        %966 = vmatprep.subr.bf16.mxu0 0
        %967 = vmatpush1.bf16.msra.mxu0 0
        %968 = vmatprep.subr.bf16.mxu0 0
        %969 = vmatpush1.bf16.msra.mxu0 0
        %970 = vmatprep.subr.bf16.mxu0 0
        %971 = vmatpush1.bf16.msra.mxu0 0
        %972 = vmatprep.mubr.bf16.mxu0 0
        %973 = vmatmul.mubr.bf16.gmra.mrb[0].mxu0 %v935
        %v974 = vpop.f32.mrb[0].mxu0
        %v975 = vadd.f32 0.0, %v974
        %v976 = vpop.f32.mrb[0].mxu0
        %v977 = vpop.f32.mrb[0].mxu0
        %v978 = vpop.f32.mrb[0].mxu0
        %979 = vdwg.mxu0
        %v980 = vstv %s914
        %v981 = vmul.f32 %v669, %v980
        %v982 = vxor.u32 %v975, 2147483648
        %v983 = vmul.f32 %v982, 1.442695
        %v984 = vpow.pop %v983
        %v985 = vadd.f32 %v984, 1.0
        %v986 = vrcp.pop %v985
        %v987 = vmul.f32 1.0, %v986
        %v988 = vstv %s915
        %v989 = vmul.f32 %v987, %v988
        %991 = vset.pattern.permute.xlu0 0
        %992 = vperm.xlu0 %991, %v981
        %v993 = vpop.permute.xlu0 %992
        %v995 = vadd.f32 %v993, %v989
        %v996 = vmul.f32 %v995, %v226
        %997 = vst.msk [vmem:[%s222] sm:$0xff] %vm353, %v996
        %s998 = scalar_lea.vmem [#allocation2], 8
        %v999 = vld [vmem:[%s998] sm:$0xff]
        %1001 = vrot.lane.b32.xlu0 %v999, 127
        %v1002 = vpop.permute.xlu0 %1001
        %1004 = vrot.lane.b32.xlu0 %v999, 126
        %v1005 = vpop.permute.xlu0 %1004
        %1007 = vrot.lane.b32.xlu0 %v999, 125
        %v1008 = vpop.permute.xlu0 %1007
        %1010 = vrot.lane.b32.xlu0 %v999, 124
        %v1011 = vpop.permute.xlu0 %1010
        %v1013 = vpack.c.bf16 %v1002, %v999
        %v1014 = vpack.c.bf16 %v1008, %v1005
        %v1015 = vpack.c.bf16 %v1011, %v1011
        %v1017 = vsel %vm550, %v1015, 0
        %1019 = vmatprep.subr.bf16.mxu0 0
        %1020 = vmatpush1.bf16.msra.mxu0 %v1013
        %1021 = vmatprep.subr.bf16.mxu0 0
        %1022 = vmatpush1.bf16.msra.mxu0 %v1014
        %1023 = vmatprep.subr.bf16.mxu0 0
        %1024 = vmatpush1.bf16.msra.mxu0 %v1017
        %1025 = vmatprep.subr.bf16.mxu0 0
        %1026 = vmatpush1.bf16.msra.mxu0 0
        %1027 = vmatprep.subr.bf16.mxu0 0
        %1028 = vmatpush1.bf16.msra.mxu0 0
        %1029 = vmatprep.subr.bf16.mxu0 0
        %1030 = vmatpush1.bf16.msra.mxu0 0
        %1031 = vmatprep.subr.bf16.mxu0 0
        %1032 = vmatpush1.bf16.msra.mxu0 0
        %1033 = vmatprep.subr.bf16.mxu0 0
        %1034 = vmatpush1.bf16.msra.mxu0 0
        %1035 = vmatprep.subr.bf16.mxu0 0
        %1036 = vmatpush1.bf16.msra.mxu0 0
        %1037 = vmatprep.subr.bf16.mxu0 0
        %1038 = vmatpush1.bf16.msra.mxu0 0
        %1039 = vmatprep.subr.bf16.mxu0 0
        %1040 = vmatpush1.bf16.msra.mxu0 0
        %1041 = vmatprep.subr.bf16.mxu0 0
        %1042 = vmatpush1.bf16.msra.mxu0 0
        %1043 = vmatprep.subr.bf16.mxu0 0
        %1044 = vmatpush1.bf16.msra.mxu0 0
        %1045 = vmatprep.subr.bf16.mxu0 0
        %1046 = vmatpush1.bf16.msra.mxu0 0
        %1047 = vmatprep.subr.bf16.mxu0 0
        %1048 = vmatpush1.bf16.msra.mxu0 0
        %1049 = vmatprep.subr.bf16.mxu0 0
        %1050 = vmatpush1.bf16.msra.mxu0 0
        %1051 = vmatprep.mubr.bf16.mxu0 0
        %1052 = vmatmul.mubr.bf16.gmra.mrb[0].mxu0 %v935
        %v1053 = vpop.f32.mrb[0].mxu0
        %v1054 = vadd.f32 0.0, %v1053
        %v1055 = vpop.f32.mrb[0].mxu0
        %v1056 = vpop.f32.mrb[0].mxu0
        %v1057 = vpop.f32.mrb[0].mxu0
        %1058 = vdwg.mxu0
        %v1059 = vxor.u32 %v1054, 2147483648
        %v1060 = vmul.f32 %v1059, 1.442695
        %v1061 = vpow.pop %v1060
        %v1062 = vadd.f32 %v1061, 1.0
        %v1063 = vrcp.pop %v1062
        %v1064 = vmul.f32 1.0, %v1063
        %v1065 = vmul.f32 %v1064, %v988
        %1066 = vset.pattern.permute.xlu0 1
        %1067 = vperm.xlu0 %1066, %v981
        %v1068 = vpop.permute.xlu0 %1067
        %v1070 = vadd.f32 %v1068, %v1065
        %v1071 = vmul.f32 %v1070, %v227
        %s1072 = scalar_lea.vmem %s222, 8 [#allocation9]
        %1073 = vst.msk [vmem:[%s1072] sm:$0xff] %vm353, %v1071
        %s1074 = scalar_lea.vmem [#allocation2], 16
        %v1075 = vld [vmem:[%s1074] sm:$0xff]
        %1077 = vrot.lane.b32.xlu0 %v1075, 127
        %v1078 = vpop.permute.xlu0 %1077
        %1080 = vrot.lane.b32.xlu0 %v1075, 126
        %v1081 = vpop.permute.xlu0 %1080
        %1083 = vrot.lane.b32.xlu0 %v1075, 125
        %v1084 = vpop.permute.xlu0 %1083
        %1086 = vrot.lane.b32.xlu0 %v1075, 124
        %v1087 = vpop.permute.xlu0 %1086
        %v1089 = vpack.c.bf16 %v1078, %v1075
        %v1090 = vpack.c.bf16 %v1084, %v1081
        %v1091 = vpack.c.bf16 %v1087, %v1087
        %v1093 = vsel %vm550, %v1091, 0
        %1095 = vmatprep.subr.bf16.mxu0 0
        %1096 = vmatpush1.bf16.msra.mxu0 %v1089
        %1097 = vmatprep.subr.bf16.mxu0 0
        %1098 = vmatpush1.bf16.msra.mxu0 %v1090
        %1099 = vmatprep.subr.bf16.mxu0 0
        %1100 = vmatpush1.bf16.msra.mxu0 %v1093
        %1101 = vmatprep.subr.bf16.mxu0 0
        %1102 = vmatpush1.bf16.msra.mxu0 0
        %1103 = vmatprep.subr.bf16.mxu0 0
        %1104 = vmatpush1.bf16.msra.mxu0 0
        %1105 = vmatprep.subr.bf16.mxu0 0
        %1106 = vmatpush1.bf16.msra.mxu0 0
        %1107 = vmatprep.subr.bf16.mxu0 0
        %1108 = vmatpush1.bf16.msra.mxu0 0
        %1109 = vmatprep.subr.bf16.mxu0 0
        %1110 = vmatpush1.bf16.msra.mxu0 0
        %1111 = vmatprep.subr.bf16.mxu0 0
        %1112 = vmatpush1.bf16.msra.mxu0 0
        %1113 = vmatprep.subr.bf16.mxu0 0
        %1114 = vmatpush1.bf16.msra.mxu0 0
        %1115 = vmatprep.subr.bf16.mxu0 0
        %1116 = vmatpush1.bf16.msra.mxu0 0
        %1117 = vmatprep.subr.bf16.mxu0 0
        %1118 = vmatpush1.bf16.msra.mxu0 0
        %1119 = vmatprep.subr.bf16.mxu0 0
        %1120 = vmatpush1.bf16.msra.mxu0 0
        %1121 = vmatprep.subr.bf16.mxu0 0
        %1122 = vmatpush1.bf16.msra.mxu0 0
        %1123 = vmatprep.subr.bf16.mxu0 0
        %1124 = vmatpush1.bf16.msra.mxu0 0
        %1125 = vmatprep.subr.bf16.mxu0 0
        %1126 = vmatpush1.bf16.msra.mxu0 0
        %1127 = vmatprep.mubr.bf16.mxu0 0
        %1128 = vmatmul.mubr.bf16.gmra.mrb[0].mxu0 %v935
        %v1129 = vpop.f32.mrb[0].mxu0
        %v1130 = vadd.f32 0.0, %v1129
        %v1131 = vpop.f32.mrb[0].mxu0
        %v1132 = vpop.f32.mrb[0].mxu0
        %v1133 = vpop.f32.mrb[0].mxu0
        %1134 = vdwg.mxu0
        %v1135 = vxor.u32 %v1130, 2147483648
        %v1136 = vmul.f32 %v1135, 1.442695
        %v1137 = vpow.pop %v1136
        %v1138 = vadd.f32 %v1137, 1.0
        %v1139 = vrcp.pop %v1138
        %v1140 = vmul.f32 1.0, %v1139
        %v1141 = vmul.f32 %v1140, %v988
        %1142 = vset.pattern.permute.xlu0 2
        %1143 = vperm.xlu0 %1142, %v981
        %v1144 = vpop.permute.xlu0 %1143
        %v1146 = vadd.f32 %v1144, %v1141
        %v1147 = vmul.f32 %v1146, %v228
        %s1148 = scalar_lea.vmem %s222, 16 [#allocation9]
        %1149 = vst.msk [vmem:[%s1148] sm:$0xff] %vm353, %v1147
        %s1150 = scalar_lea.vmem [#allocation2], 24
        %v1151 = vld [vmem:[%s1150] sm:$0xff]
        %1153 = vrot.lane.b32.xlu0 %v1151, 127
        %v1154 = vpop.permute.xlu0 %1153
        %1156 = vrot.lane.b32.xlu0 %v1151, 126
        %v1157 = vpop.permute.xlu0 %1156
        %1159 = vrot.lane.b32.xlu0 %v1151, 125
        %v1160 = vpop.permute.xlu0 %1159
        %1162 = vrot.lane.b32.xlu0 %v1151, 124
        %v1163 = vpop.permute.xlu0 %1162
        %v1165 = vpack.c.bf16 %v1154, %v1151
        %v1166 = vpack.c.bf16 %v1160, %v1157
        %v1167 = vpack.c.bf16 %v1163, %v1163
        %v1169 = vsel %vm550, %v1167, 0
        %1171 = vmatprep.subr.bf16.mxu0 0
        %1172 = vmatpush1.bf16.msra.mxu0 %v1165
        %1173 = vmatprep.subr.bf16.mxu0 0
        %1174 = vmatpush1.bf16.msra.mxu0 %v1166
        %1175 = vmatprep.subr.bf16.mxu0 0
        %1176 = vmatpush1.bf16.msra.mxu0 %v1169
        %1177 = vmatprep.subr.bf16.mxu0 0
        %1178 = vmatpush1.bf16.msra.mxu0 0
        %1179 = vmatprep.subr.bf16.mxu0 0
        %1180 = vmatpush1.bf16.msra.mxu0 0
        %1181 = vmatprep.subr.bf16.mxu0 0
        %1182 = vmatpush1.bf16.msra.mxu0 0
        %1183 = vmatprep.subr.bf16.mxu0 0
        %1184 = vmatpush1.bf16.msra.mxu0 0
        %1185 = vmatprep.subr.bf16.mxu0 0
        %1186 = vmatpush1.bf16.msra.mxu0 0
        %1187 = vmatprep.subr.bf16.mxu0 0
        %1188 = vmatpush1.bf16.msra.mxu0 0
        %1189 = vmatprep.subr.bf16.mxu0 0
        %1190 = vmatpush1.bf16.msra.mxu0 0
        %1191 = vmatprep.subr.bf16.mxu0 0
        %1192 = vmatpush1.bf16.msra.mxu0 0
        %1193 = vmatprep.subr.bf16.mxu0 0
        %1194 = vmatpush1.bf16.msra.mxu0 0
        %1195 = vmatprep.subr.bf16.mxu0 0
        %1196 = vmatpush1.bf16.msra.mxu0 0
        %1197 = vmatprep.subr.bf16.mxu0 0
        %1198 = vmatpush1.bf16.msra.mxu0 0
        %1199 = vmatprep.subr.bf16.mxu0 0
        %1200 = vmatpush1.bf16.msra.mxu0 0
        %1201 = vmatprep.subr.bf16.mxu0 0
        %1202 = vmatpush1.bf16.msra.mxu0 0
        %1203 = vmatprep.mubr.bf16.mxu0 0
        %1204 = vmatmul.mubr.bf16.gmra.mrb[0].mxu0 %v935
        %v1205 = vpop.f32.mrb[0].mxu0
        %v1206 = vadd.f32 0.0, %v1205
        %v1207 = vpop.f32.mrb[0].mxu0
        %v1208 = vpop.f32.mrb[0].mxu0
        %v1209 = vpop.f32.mrb[0].mxu0
        %1210 = vdwg.mxu0
        %v1211 = vxor.u32 %v1206, 2147483648
        %v1212 = vmul.f32 %v1211, 1.442695
        %v1213 = vpow.pop %v1212
        %v1214 = vadd.f32 %v1213, 1.0
        %v1215 = vrcp.pop %v1214
        %v1216 = vmul.f32 1.0, %v1215
        %v1217 = vmul.f32 %v1216, %v988
        %1218 = vset.pattern.permute.xlu0 3
        %1219 = vperm.xlu0 %1218, %v981
        %v1220 = vpop.permute.xlu0 %1219
        %v1222 = vadd.f32 %v1220, %v1217
        %v1223 = vmul.f32 %v1222, %v229
        %s1224 = scalar_lea.vmem %s222, 24 [#allocation9]
        %1225 = vst.msk [vmem:[%s1224] sm:$0xff] %vm353, %v1223
        %s1226 = sand.u32 %s125, 1
        %s1227 = scalar_lea.sflag [#allocation8], %s1226
        %s1228 = sand.u32 %s125, 1
        %s1229 = smul.addr %s1228, 32
        %s1230 = scalar_lea.vmem [#allocation9], %s1229
        // Predicated region
        $region41: #{tpu_custom_call.1} parent=35 // pred_check
          %p1231 = pneg %p135
        $region42: #{tpu_custom_call.1} parent=35 // pred_check_branch
          %1233 = sbr.rel (%p1231) target = $region44
        $region43: #{tpu_custom_call.1} parent=35 // pred_region
          %s1234 = smul.u32 4, %s28
          %s1236 = ssub.s32 512, 512
          %1237 = vsyncadd %s1227, %s1236
          %s1238 = smul.addr %s1234, 128
          %s1239 = scalar_lea.hbm %s5, %s1238
          %s1240 = sshll.u32 %s1230, 4
          %s1241 = int_to_ptr.vmem [resolvable:$true] %s1240
          %1246 = dma.vmem_to_hbm [thread:$0]  %s1241, 512, %s1239, %s1227, 128, 128, 8
        $region44: #{tpu_custom_call.1} parent=35 // pred_fallthru
          _
      $region36: #{tpu_custom_call.1} parent=5 // pred_fallthru
        _
      %p1247 = scmp.le.s32.totalorder 2, %s23
      // Predicated region
      $region45: #{tpu_custom_call.1} parent=5 // pred_check
        %p1248 = pneg %p1247
      $region46: #{tpu_custom_call.1} parent=5 // pred_check_branch
        %1250 = sbr.rel (%p1248) target = $region48
      $region47: #{tpu_custom_call.1} parent=5 // pred_region
        %s1251 = ssub.s32 %s23, 2
        // Predicated region
        $region49: #{tpu_custom_call.1} parent=47 // pred_check
          %p1252 = pneg %p141
        $region50: #{tpu_custom_call.1} parent=47 // pred_check_branch
          %1254 = sbr.rel (%p1252) target = $region52
        $region51: #{tpu_custom_call.1} parent=47 // pred_region
          %s1255 = sand.u32 %s126, 1
          %s1256 = scalar_lea.sflag [#allocation8], %s1255
          %s1257 = sand.u32 %s126, 1
          %s1258 = smul.addr %s1257, 32
          %s1259 = scalar_lea.vmem [#allocation9], %s1258
          %1260 = dma.done %s1256, 512
        $region52: #{tpu_custom_call.1} parent=47 // pred_fallthru
          _
      $region48: #{tpu_custom_call.1} parent=5 // pred_fallthru
        _
    $region6: #{tpu_custom_call.1} parent=1 // loop_footer
      %s27 = sadd.s32 1, %s23
    $region7: #{tpu_custom_call.1} parent=1 // loop_footer_branch
      %22 = sbr.rel target = $region3
    $region8: #{tpu_custom_call.1} parent=1 // loop_exit
      _
    %1261 = vsyncpa [#allocation7], 1
    %s1262 = scalar_lea.sflag [#allocation7], 1
    %1263 = vsyncpa %s1262, 1
    %1264 = vsyncpa [#allocation8], 1
    %s1265 = scalar_lea.sflag [#allocation8], 1
    %1266 = vsyncpa %s1265, 1

</llo_original>
